<compile_context>
chip_gen: v7x
topology: tpu7x:2x2x1
jax: 0.10.0
libtpu: 0.0.40
codegen_flags: <defaults>
</compile_context>

<pallas_src>
import math

import jax
import jax.numpy as jnp
from jax.experimental import pallas as pl
from jax.experimental.pallas import tpu as pltpu

EMBED_DIM = 64
NUM_HEADS = 8
NUM_GROUPS = 4
HEAD_DIM = EMBED_DIM // NUM_HEADS          # 8
GROUP_SIZE = NUM_HEADS // NUM_GROUPS       # 2
# TODO(synk): the reference module's kv_proj width (embed_dim*2//num_groups=32)
# is inconsistent with its own reshape to (B, S, num_groups, 2*head_dim) = 64
# features per token (PyTorch would raise at that reshape).  We use the clearly
# intended GQA width num_groups * 2 * head_dim so the forward is well-defined.
KV_DIM = NUM_GROUPS * 2 * HEAD_DIM         # 64
QKV_DIM = EMBED_DIM + KV_DIM               # 128


def gqa_kernel(x_ref, wqkv_ref, bqkv_ref, wot_ref, bo_ref, o_ref):
    """Whole batch in one invocation; x is (B, S, E), weights are pre-fused."""
    B, S, _ = x_ref.shape

    for b in range(B):                      # B=2, fully unrolled; no grid steps
        # Feature-major view of this batch row: (E, S).  In-VMEM 2-D transpose
        # (XLU) instead of a wrapper-side HBM round trip.
        xt = jnp.transpose(x_ref[b], (1, 0)).astype(jnp.bfloat16)        # (E, S)

        # --- Fused Q+KV projection: ONE MXU matmul (scale folded into wq). ---
        qkvt = jnp.dot(wqkv_ref[...], xt,
                       preferred_element_type=jnp.float32) + bqkv_ref[...]   # (2E, S) f32
        qt = qkvt[:EMBED_DIM]                                            # (E, S)
        kvt = qkvt[EMBED_DIM:]                                           # (KV, S)

        # --- Group-folded views.  Feature axis == sublane axis (tile aligned). ---
        # q per group, token-major with GROUP_SIZE folded into the rows:
        #   (G, GROUP_SIZE*S, Dh)   (last-two-dim transpose only).
        q_g = jnp.transpose(qt.reshape(NUM_GROUPS, GROUP_SIZE, HEAD_DIM, S),
                            (0, 1, 3, 2)).reshape(NUM_GROUPS, GROUP_SIZE * S, HEAD_DIM)
        kv_g = kvt.reshape(NUM_GROUPS, 2 * HEAD_DIM, S)
        kt_g = kv_g[:, :HEAD_DIM, :]        # (G, Dh, S)  == K^T (no K/V broadcast)
        vt_g = kv_g[:, HEAD_DIM:, :]        # (G, Dh, S)  == V^T

        # --- Scores: batch=G (4) matmuls of (GROUP_SIZE*S, Dh, S); bf16 MXU. ---
        s = jnp.einsum('nqd,ndk->nqk',
                       q_g.astype(jnp.bfloat16), kt_g.astype(jnp.bfloat16),
                       preferred_element_type=jnp.float32)               # (G, 2S, S) f32

        # Softmax (f32 elementwise), normalization deferred past the PV matmul.
        m = jnp.max(s, axis=-1, keepdims=True)
        p_un = jnp.exp(s - m)                                            # unnormalized
        l = jnp.sum(p_un, axis=-1)                                       # (G, 2S)

        # --- PV on unnormalized weights, feature-major output (G, Dh, 2S). ---
        ot = jnp.einsum('ndk,nqk->ndq',
                        vt_g.astype(jnp.bfloat16), p_un.astype(jnp.bfloat16),
                        preferred_element_type=jnp.float32)
        ot = ot * pl.reciprocal(l, approx=True)[:, None, :]              # deferred 1/l (EUP)

        # --- Heads back onto the feature (sublane) axis in (g, p, d) order. ---
        attn_t = jnp.concatenate(
            [ot[g, :, p * S:(p + 1) * S]
             for g in range(NUM_GROUPS) for p in range(GROUP_SIZE)],
            axis=0)                                                      # (E, S)

        # --- Output projection: one (64,64)@(64,S) matmul + bias. ---
        out_t = jnp.dot(wot_ref[...], attn_t.astype(jnp.bfloat16),
                        preferred_element_type=jnp.float32) + bo_ref[...]
        o_ref[b] = jnp.transpose(out_t, (1, 0)).astype(o_ref.dtype)      # (S, E)


def gqa_forward(x, wq, bq, wkv, bkv, wo, bo):
    """Wrapper: weight fusion / scale folding / bf16 casts + one pallas_call."""
    B, S, E = x.shape
    scale = 1.0 / math.sqrt(HEAD_DIM)

    # Fused projection weight: rows = [pre-scaled Q features ; KV features].
    wqkv_t = jnp.concatenate([(wq * scale).T, wkv.T], axis=0).astype(jnp.bfloat16)  # (2E, E)
    bqkv = jnp.concatenate([bq * scale, bkv]).reshape(QKV_DIM, 1)                   # f32
    wot = wo.T.astype(jnp.bfloat16)                                                  # (E, E)
    bo_c = bo.reshape(E, 1)                                                          # f32

    return pl.pallas_call(
        gqa_kernel,
        out_shape=jax.ShapeDtypeStruct((B, S, E), x.dtype),
        grid=(1,),
        in_specs=[
            pl.BlockSpec((B, S, E), lambda i: (0, 0, 0)),
            pl.BlockSpec(wqkv_t.shape, lambda i: (0, 0)),
            pl.BlockSpec(bqkv.shape, lambda i: (0, 0)),
            pl.BlockSpec(wot.shape, lambda i: (0, 0)),
            pl.BlockSpec(bo_c.shape, lambda i: (0, 0)),
        ],
        out_specs=pl.BlockSpec((B, S, E), lambda i: (0, 0, 0)),
        compiler_params=pltpu.CompilerParams(dimension_semantics=("arbitrary",)),
    )(x, wqkv_t, bqkv, wot, bo_c)


def gqa_reference(x, wq, bq, wkv, bkv, wo, bo):
    """Pure-JAX f32 mirror of the PyTorch forward (for validation)."""
    B, S, E = x.shape
    q = x @ wq + bq
    kv = x @ wkv + bkv
    q = q.reshape(B, S, NUM_HEADS, HEAD_DIM).transpose(0, 2, 1, 3)
    kv = kv.reshape(B, S, NUM_GROUPS, 2 * HEAD_DIM).transpose(0, 2, 1, 3)
    k, v = kv[..., :HEAD_DIM], kv[..., HEAD_DIM:]
    k = jnp.repeat(k, GROUP_SIZE, axis=1)      # repeat_interleave
    v = jnp.repeat(v, GROUP_SIZE, axis=1)
    s = jnp.einsum('bhqd,bhkd->bhqk', q, k) / math.sqrt(HEAD_DIM)
    p = jax.nn.softmax(s, axis=-1)
    o = jnp.einsum('bhqk,bhkd->bhqd', p, v)
    o = o.transpose(0, 2, 1, 3).reshape(B, S, E)
    return o @ wo + bo


if __name__ == "__main__":
    B, S = 2, 8
    key = jax.random.PRNGKey(0)
    kx, kwq, kbq, kwkv, kbkv, kwo, kbo = jax.random.split(key, 7)

    bound = 1.0 / math.sqrt(EMBED_DIM)
    x = jax.random.normal(kx, (B, S, EMBED_DIM), dtype=jnp.float32)
    wq = jax.random.uniform(kwq, (EMBED_DIM, EMBED_DIM), jnp.float32, -bound, bound)
    bq = jax.random.uniform(kbq, (EMBED_DIM,), jnp.float32, -bound, bound)
    wkv = jax.random.uniform(kwkv, (EMBED_DIM, KV_DIM), jnp.float32, -bound, bound)
    bkv = jax.random.uniform(kbkv, (KV_DIM,), jnp.float32, -bound, bound)
    wo = jax.random.uniform(kwo, (EMBED_DIM, EMBED_DIM), jnp.float32, -bound, bound)
    bo = jax.random.uniform(kbo, (EMBED_DIM,), jnp.float32, -bound, bound)

    out = jax.block_until_ready(gqa_forward(x, wq, bq, wkv, bkv, wo, bo))
    ref = jax.block_until_ready(gqa_reference(x, wq, bq, wkv, bkv, wo, bo))

    assert out.shape == (B, S, EMBED_DIM), out.shape
    # Tolerance loosened slightly vs the pure-f32 version: MXU operands are
    # bf16 (f32 accumulation) and the softmax denominator uses the EUP approx
    # reciprocal.
    assert jnp.allclose(out, ref, rtol=2e-2, atol=2e-2), "mismatch vs reference"
    print("KERNEL_OK")
</pallas_src>

<mosaic_0001>
module attributes {stable_mosaic.version = 11 : i64} {
  func.func @gqa_kernel(%arg0: i32, %arg1: memref<2x8x64xf32, #tpu.memory_space<vmem>>, %arg2: memref<128x64xbf16, #tpu.memory_space<vmem>>, %arg3: memref<128x1xf32, #tpu.memory_space<vmem>>, %arg4: memref<64x64xbf16, #tpu.memory_space<vmem>>, %arg5: memref<64x1xf32, #tpu.memory_space<vmem>>, %arg6: memref<2x8x64xf32, #tpu.memory_space<vmem>>) attributes {dimension_semantics = [#tpu.dimension_semantics<arbitrary>], iteration_bounds = array<i64: 1>, scalar_prefetch = 0 : i64, scratch_operands = 0 : i64, tpu.core_type = #tpu.core_type<tc>, window_params = [{pipeline_mode = #tpu.pipeline_mode<synchronous>, transform_indices = @transform_0, window_bounds = array<i64: 2, 8, 64>}, {pipeline_mode = #tpu.pipeline_mode<synchronous>, transform_indices = @transform_1, window_bounds = array<i64: 128, 64>}, {pipeline_mode = #tpu.pipeline_mode<synchronous>, transform_indices = @transform_2, window_bounds = array<i64: 128, 1>}, {pipeline_mode = #tpu.pipeline_mode<synchronous>, transform_indices = @transform_3, window_bounds = array<i64: 64, 64>}, {pipeline_mode = #tpu.pipeline_mode<synchronous>, transform_indices = @transform_4, window_bounds = array<i64: 64, 1>}, {pipeline_mode = #tpu.pipeline_mode<synchronous>, transform_indices = @transform_5, window_bounds = array<i64: 2, 8, 64>}]} {
    %c0 = arith.constant 0 : index
    %c0_0 = arith.constant 0 : index
    %c0_1 = arith.constant 0 : index
    %0 = vector.load %arg1[%c0, %c0_0, %c0_1] : memref<2x8x64xf32, #tpu.memory_space<vmem>>, vector<1x8x64xf32>
    %1 = vector.shape_cast %0 : vector<1x8x64xf32> to vector<8x64xf32>
    %2 = tpu.transpose %1, [1, 0] : vector<8x64xf32> -> vector<64x8xf32>
    %3 = arith.truncf %2 : vector<64x8xf32> to vector<64x8xbf16>
    %c0_2 = arith.constant 0 : index
    %c0_3 = arith.constant 0 : index
    %4 = vector.load %arg2[%c0_2, %c0_3] : memref<128x64xbf16, #tpu.memory_space<vmem>>, vector<128x64xbf16>
    %cst = arith.constant dense<0.000000e+00> : vector<128x8xf32>
    %5 = tpu.matmul %4, %3, %cst {dimension_numbers = #tpu.dot_dimension_numbers<[1], [0], [0], [1], [0, 0, 1, 1], [], []>} : vector<128x64xbf16>, vector<64x8xbf16>, vector<128x8xf32> -> vector<128x8xf32>
    %c0_4 = arith.constant 0 : index
    %c0_5 = arith.constant 0 : index
    %6 = vector.load %arg3[%c0_4, %c0_5] : memref<128x1xf32, #tpu.memory_space<vmem>>, vector<128x1xf32>
    %7 = vector.broadcast %6 : vector<128x1xf32> to vector<128x8xf32>
    %8 = arith.addf %5, %7 : vector<128x8xf32>
    %9 = vector.extract_strided_slice %8 {offsets = [0, 0], sizes = [64, 8], strides = [1, 1]} : vector<128x8xf32> to vector<64x8xf32>
    %10 = vector.extract_strided_slice %8 {offsets = [64, 0], sizes = [64, 8], strides = [1, 1]} : vector<128x8xf32> to vector<64x8xf32>
    %11 = vector.shape_cast %9 : vector<64x8xf32> to vector<4x2x8x8xf32>
    %12 = tpu.transpose %11, [0, 1, 3, 2] : vector<4x2x8x8xf32> -> vector<4x2x8x8xf32>
    %13 = vector.shape_cast %12 : vector<4x2x8x8xf32> to vector<4x16x8xf32>
    %14 = vector.shape_cast %10 : vector<64x8xf32> to vector<4x16x8xf32>
    %15 = vector.extract_strided_slice %14 {offsets = [0, 0, 0], sizes = [4, 8, 8], strides = [1, 1, 1]} : vector<4x16x8xf32> to vector<4x8x8xf32>
    %16 = vector.extract_strided_slice %14 {offsets = [0, 8, 0], sizes = [4, 8, 8], strides = [1, 1, 1]} : vector<4x16x8xf32> to vector<4x8x8xf32>
    %17 = arith.truncf %13 : vector<4x16x8xf32> to vector<4x16x8xbf16>
    %18 = arith.truncf %15 : vector<4x8x8xf32> to vector<4x8x8xbf16>
    "tpu.trace_start"() <{level = 10 : i32, message = "nqd,ndk->nqk"}> : () -> ()
    %cst_6 = arith.constant dense<0.000000e+00> : vector<4x16x8xf32>
    %19 = tpu.matmul %17, %18, %cst_6 {dimension_numbers = #tpu.dot_dimension_numbers<[2], [1], [1], [2], [0, 0, 0, 1, 1, 2], [0], [0]>} : vector<4x16x8xbf16>, vector<4x8x8xbf16>, vector<4x16x8xf32> -> vector<4x16x8xf32>
    "tpu.trace_stop"() : () -> ()
    %cst_7 = arith.constant dense<0xFF800000> : vector<4x16xf32>
    %20 = vector.multi_reduction <maximumf>, %19, %cst_7 [2] : vector<4x16x8xf32> to vector<4x16xf32>
    %21 = vector.shape_cast %20 : vector<4x16xf32> to vector<4x16x1xf32>
    %22 = vector.broadcast %21 : vector<4x16x1xf32> to vector<4x16x8xf32>
    %23 = arith.subf %19, %22 : vector<4x16x8xf32>
    %24 = math.exp %23 : vector<4x16x8xf32>
    %cst_8 = arith.constant dense<0.000000e+00> : vector<4x16xf32>
    %25 = vector.multi_reduction <add>, %24, %cst_8 [2] : vector<4x16x8xf32> to vector<4x16xf32>
    %26 = arith.truncf %16 : vector<4x8x8xf32> to vector<4x8x8xbf16>
    %27 = arith.truncf %24 : vector<4x16x8xf32> to vector<4x16x8xbf16>
    "tpu.trace_start"() <{level = 10 : i32, message = "ndk,nqk->ndq"}> : () -> ()
    %cst_9 = arith.constant dense<0.000000e+00> : vector<4x8x16xf32>
    %28 = tpu.matmul %26, %27, %cst_9 {dimension_numbers = #tpu.dot_dimension_numbers<[2], [2], [1], [1], [0, 0, 0, 1, 1, 1], [0], [0]>} : vector<4x8x8xbf16>, vector<4x16x8xbf16>, vector<4x8x16xf32> -> vector<4x8x16xf32>
    "tpu.trace_stop"() : () -> ()
    %29 = tpu.reciprocal %25 {approx = true} : vector<4x16xf32> -> vector<4x16xf32>
    %30 = vector.shape_cast %29 : vector<4x16xf32> to vector<4x1x16xf32>
    %31 = vector.broadcast %30 : vector<4x1x16xf32> to vector<4x8x16xf32>
    %32 = arith.mulf %28, %31 : vector<4x8x16xf32>
    %33 = vector.extract_strided_slice %32 {offsets = [0, 0, 0], sizes = [1, 8, 8], strides = [1, 1, 1]} : vector<4x8x16xf32> to vector<1x8x8xf32>
    %34 = vector.shape_cast %33 : vector<1x8x8xf32> to vector<8x8xf32>
    %35 = vector.extract_strided_slice %32 {offsets = [0, 0, 8], sizes = [1, 8, 8], strides = [1, 1, 1]} : vector<4x8x16xf32> to vector<1x8x8xf32>
    %36 = vector.shape_cast %35 : vector<1x8x8xf32> to vector<8x8xf32>
    %37 = vector.extract_strided_slice %32 {offsets = [1, 0, 0], sizes = [1, 8, 8], strides = [1, 1, 1]} : vector<4x8x16xf32> to vector<1x8x8xf32>
    %38 = vector.shape_cast %37 : vector<1x8x8xf32> to vector<8x8xf32>
    %39 = vector.extract_strided_slice %32 {offsets = [1, 0, 8], sizes = [1, 8, 8], strides = [1, 1, 1]} : vector<4x8x16xf32> to vector<1x8x8xf32>
    %40 = vector.shape_cast %39 : vector<1x8x8xf32> to vector<8x8xf32>
    %41 = vector.extract_strided_slice %32 {offsets = [2, 0, 0], sizes = [1, 8, 8], strides = [1, 1, 1]} : vector<4x8x16xf32> to vector<1x8x8xf32>
    %42 = vector.shape_cast %41 : vector<1x8x8xf32> to vector<8x8xf32>
    %43 = vector.extract_strided_slice %32 {offsets = [2, 0, 8], sizes = [1, 8, 8], strides = [1, 1, 1]} : vector<4x8x16xf32> to vector<1x8x8xf32>
    %44 = vector.shape_cast %43 : vector<1x8x8xf32> to vector<8x8xf32>
    %45 = vector.extract_strided_slice %32 {offsets = [3, 0, 0], sizes = [1, 8, 8], strides = [1, 1, 1]} : vector<4x8x16xf32> to vector<1x8x8xf32>
    %46 = vector.shape_cast %45 : vector<1x8x8xf32> to vector<8x8xf32>
    %47 = vector.extract_strided_slice %32 {offsets = [3, 0, 8], sizes = [1, 8, 8], strides = [1, 1, 1]} : vector<4x8x16xf32> to vector<1x8x8xf32>
    %48 = vector.shape_cast %47 : vector<1x8x8xf32> to vector<8x8xf32>
    %49 = tpu.concatenate %34, %36, %38, %40, %42, %44, %46, %48 in 0 : vector<8x8xf32>, vector<8x8xf32>, vector<8x8xf32>, vector<8x8xf32>, vector<8x8xf32>, vector<8x8xf32>, vector<8x8xf32>, vector<8x8xf32> -> vector<64x8xf32>
    %c0_10 = arith.constant 0 : index
    %c0_11 = arith.constant 0 : index
    %50 = vector.load %arg4[%c0_10, %c0_11] : memref<64x64xbf16, #tpu.memory_space<vmem>>, vector<64x64xbf16>
    %51 = arith.truncf %49 : vector<64x8xf32> to vector<64x8xbf16>
    %cst_12 = arith.constant dense<0.000000e+00> : vector<64x8xf32>
    %52 = tpu.matmul %50, %51, %cst_12 {dimension_numbers = #tpu.dot_dimension_numbers<[1], [0], [0], [1], [0, 0, 1, 1], [], []>} : vector<64x64xbf16>, vector<64x8xbf16>, vector<64x8xf32> -> vector<64x8xf32>
    %c0_13 = arith.constant 0 : index
    %c0_14 = arith.constant 0 : index
    %53 = vector.load %arg5[%c0_13, %c0_14] : memref<64x1xf32, #tpu.memory_space<vmem>>, vector<64x1xf32>
    %54 = vector.broadcast %53 : vector<64x1xf32> to vector<64x8xf32>
    %55 = arith.addf %52, %54 : vector<64x8xf32>
    %56 = tpu.transpose %55, [1, 0] : vector<64x8xf32> -> vector<8x64xf32>
    %c0_15 = arith.constant 0 : index
    %c0_16 = arith.constant 0 : index
    %c0_17 = arith.constant 0 : index
    %57 = vector.load %arg6[%c0_15, %c0_16, %c0_17] : memref<2x8x64xf32, #tpu.memory_space<vmem>>, vector<1x8x64xf32>
    %58 = vector.shape_cast %57 : vector<1x8x64xf32> to vector<8x64xf32>
    %59 = vector.shape_cast %56 : vector<8x64xf32> to vector<1x8x64xf32>
    tpu.vector_store %arg6[%c0_15, %c0_16, %c0_17], %59 {strides = array<i32>} : memref<2x8x64xf32, #tpu.memory_space<vmem>>, vector<1x8x64xf32>,
    %c1 = arith.constant 1 : index
    %c0_18 = arith.constant 0 : index
    %c0_19 = arith.constant 0 : index
    %60 = vector.load %arg1[%c1, %c0_18, %c0_19] : memref<2x8x64xf32, #tpu.memory_space<vmem>>, vector<1x8x64xf32>
    %61 = vector.shape_cast %60 : vector<1x8x64xf32> to vector<8x64xf32>
    %62 = tpu.transpose %61, [1, 0] : vector<8x64xf32> -> vector<64x8xf32>
    %63 = arith.truncf %62 : vector<64x8xf32> to vector<64x8xbf16>
    %c0_20 = arith.constant 0 : index
    %c0_21 = arith.constant 0 : index
    %64 = vector.load %arg2[%c0_20, %c0_21] : memref<128x64xbf16, #tpu.memory_space<vmem>>, vector<128x64xbf16>
    %cst_22 = arith.constant dense<0.000000e+00> : vector<128x8xf32>
    %65 = tpu.matmul %64, %63, %cst_22 {dimension_numbers = #tpu.dot_dimension_numbers<[1], [0], [0], [1], [0, 0, 1, 1], [], []>} : vector<128x64xbf16>, vector<64x8xbf16>, vector<128x8xf32> -> vector<128x8xf32>
    %c0_23 = arith.constant 0 : index
    %c0_24 = arith.constant 0 : index
    %66 = vector.load %arg3[%c0_23, %c0_24] : memref<128x1xf32, #tpu.memory_space<vmem>>, vector<128x1xf32>
    %67 = vector.broadcast %66 : vector<128x1xf32> to vector<128x8xf32>
    %68 = arith.addf %65, %67 : vector<128x8xf32>
    %69 = vector.extract_strided_slice %68 {offsets = [0, 0], sizes = [64, 8], strides = [1, 1]} : vector<128x8xf32> to vector<64x8xf32>
    %70 = vector.extract_strided_slice %68 {offsets = [64, 0], sizes = [64, 8], strides = [1, 1]} : vector<128x8xf32> to vector<64x8xf32>
    %71 = vector.shape_cast %69 : vector<64x8xf32> to vector<4x2x8x8xf32>
    %72 = tpu.transpose %71, [0, 1, 3, 2] : vector<4x2x8x8xf32> -> vector<4x2x8x8xf32>
    %73 = vector.shape_cast %72 : vector<4x2x8x8xf32> to vector<4x16x8xf32>
    %74 = vector.shape_cast %70 : vector<64x8xf32> to vector<4x16x8xf32>
    %75 = vector.extract_strided_slice %74 {offsets = [0, 0, 0], sizes = [4, 8, 8], strides = [1, 1, 1]} : vector<4x16x8xf32> to vector<4x8x8xf32>
    %76 = vector.extract_strided_slice %74 {offsets = [0, 8, 0], sizes = [4, 8, 8], strides = [1, 1, 1]} : vector<4x16x8xf32> to vector<4x8x8xf32>
    %77 = arith.truncf %73 : vector<4x16x8xf32> to vector<4x16x8xbf16>
    %78 = arith.truncf %75 : vector<4x8x8xf32> to vector<4x8x8xbf16>
    "tpu.trace_start"() <{level = 10 : i32, message = "nqd,ndk->nqk"}> : () -> ()
    %cst_25 = arith.constant dense<0.000000e+00> : vector<4x16x8xf32>
    %79 = tpu.matmul %77, %78, %cst_25 {dimension_numbers = #tpu.dot_dimension_numbers<[2], [1], [1], [2], [0, 0, 0, 1, 1, 2], [0], [0]>} : vector<4x16x8xbf16>, vector<4x8x8xbf16>, vector<4x16x8xf32> -> vector<4x16x8xf32>
    "tpu.trace_stop"() : () -> ()
    %cst_26 = arith.constant dense<0xFF800000> : vector<4x16xf32>
    %80 = vector.multi_reduction <maximumf>, %79, %cst_26 [2] : vector<4x16x8xf32> to vector<4x16xf32>
    %81 = vector.shape_cast %80 : vector<4x16xf32> to vector<4x16x1xf32>
    %82 = vector.broadcast %81 : vector<4x16x1xf32> to vector<4x16x8xf32>
    %83 = arith.subf %79, %82 : vector<4x16x8xf32>
    %84 = math.exp %83 : vector<4x16x8xf32>
    %cst_27 = arith.constant dense<0.000000e+00> : vector<4x16xf32>
    %85 = vector.multi_reduction <add>, %84, %cst_27 [2] : vector<4x16x8xf32> to vector<4x16xf32>
    %86 = arith.truncf %76 : vector<4x8x8xf32> to vector<4x8x8xbf16>
    %87 = arith.truncf %84 : vector<4x16x8xf32> to vector<4x16x8xbf16>
    "tpu.trace_start"() <{level = 10 : i32, message = "ndk,nqk->ndq"}> : () -> ()
    %cst_28 = arith.constant dense<0.000000e+00> : vector<4x8x16xf32>
    %88 = tpu.matmul %86, %87, %cst_28 {dimension_numbers = #tpu.dot_dimension_numbers<[2], [2], [1], [1], [0, 0, 0, 1, 1, 1], [0], [0]>} : vector<4x8x8xbf16>, vector<4x16x8xbf16>, vector<4x8x16xf32> -> vector<4x8x16xf32>
    "tpu.trace_stop"() : () -> ()
    %89 = tpu.reciprocal %85 {approx = true} : vector<4x16xf32> -> vector<4x16xf32>
    %90 = vector.shape_cast %89 : vector<4x16xf32> to vector<4x1x16xf32>
    %91 = vector.broadcast %90 : vector<4x1x16xf32> to vector<4x8x16xf32>
    %92 = arith.mulf %88, %91 : vector<4x8x16xf32>
    %93 = vector.extract_strided_slice %92 {offsets = [0, 0, 0], sizes = [1, 8, 8], strides = [1, 1, 1]} : vector<4x8x16xf32> to vector<1x8x8xf32>
    %94 = vector.shape_cast %93 : vector<1x8x8xf32> to vector<8x8xf32>
    %95 = vector.extract_strided_slice %92 {offsets = [0, 0, 8], sizes = [1, 8, 8], strides = [1, 1, 1]} : vector<4x8x16xf32> to vector<1x8x8xf32>
    %96 = vector.shape_cast %95 : vector<1x8x8xf32> to vector<8x8xf32>
    %97 = vector.extract_strided_slice %92 {offsets = [1, 0, 0], sizes = [1, 8, 8], strides = [1, 1, 1]} : vector<4x8x16xf32> to vector<1x8x8xf32>
    %98 = vector.shape_cast %97 : vector<1x8x8xf32> to vector<8x8xf32>
    %99 = vector.extract_strided_slice %92 {offsets = [1, 0, 8], sizes = [1, 8, 8], strides = [1, 1, 1]} : vector<4x8x16xf32> to vector<1x8x8xf32>
    %100 = vector.shape_cast %99 : vector<1x8x8xf32> to vector<8x8xf32>
    %101 = vector.extract_strided_slice %92 {offsets = [2, 0, 0], sizes = [1, 8, 8], strides = [1, 1, 1]} : vector<4x8x16xf32> to vector<1x8x8xf32>
    %102 = vector.shape_cast %101 : vector<1x8x8xf32> to vector<8x8xf32>
    %103 = vector.extract_strided_slice %92 {offsets = [2, 0, 8], sizes = [1, 8, 8], strides = [1, 1, 1]} : vector<4x8x16xf32> to vector<1x8x8xf32>
    %104 = vector.shape_cast %103 : vector<1x8x8xf32> to vector<8x8xf32>
    %105 = vector.extract_strided_slice %92 {offsets = [3, 0, 0], sizes = [1, 8, 8], strides = [1, 1, 1]} : vector<4x8x16xf32> to vector<1x8x8xf32>
    %106 = vector.shape_cast %105 : vector<1x8x8xf32> to vector<8x8xf32>
    %107 = vector.extract_strided_slice %92 {offsets = [3, 0, 8], sizes = [1, 8, 8], strides = [1, 1, 1]} : vector<4x8x16xf32> to vector<1x8x8xf32>
    %108 = vector.shape_cast %107 : vector<1x8x8xf32> to vector<8x8xf32>
    %109 = tpu.concatenate %94, %96, %98, %100, %102, %104, %106, %108 in 0 : vector<8x8xf32>, vector<8x8xf32>, vector<8x8xf32>, vector<8x8xf32>, vector<8x8xf32>, vector<8x8xf32>, vector<8x8xf32>, vector<8x8xf32> -> vector<64x8xf32>
    %c0_29 = arith.constant 0 : index
    %c0_30 = arith.constant 0 : index
    %110 = vector.load %arg4[%c0_29, %c0_30] : memref<64x64xbf16, #tpu.memory_space<vmem>>, vector<64x64xbf16>
    %111 = arith.truncf %109 : vector<64x8xf32> to vector<64x8xbf16>
    %cst_31 = arith.constant dense<0.000000e+00> : vector<64x8xf32>
    %112 = tpu.matmul %110, %111, %cst_31 {dimension_numbers = #tpu.dot_dimension_numbers<[1], [0], [0], [1], [0, 0, 1, 1], [], []>} : vector<64x64xbf16>, vector<64x8xbf16>, vector<64x8xf32> -> vector<64x8xf32>
    %c0_32 = arith.constant 0 : index
    %c0_33 = arith.constant 0 : index
    %113 = vector.load %arg5[%c0_32, %c0_33] : memref<64x1xf32, #tpu.memory_space<vmem>>, vector<64x1xf32>
    %114 = vector.broadcast %113 : vector<64x1xf32> to vector<64x8xf32>
    %115 = arith.addf %112, %114 : vector<64x8xf32>
    %116 = tpu.transpose %115, [1, 0] : vector<64x8xf32> -> vector<8x64xf32>
    %c1_34 = arith.constant 1 : index
    %c0_35 = arith.constant 0 : index
    %c0_36 = arith.constant 0 : index
    %117 = vector.load %arg6[%c1_34, %c0_35, %c0_36] : memref<2x8x64xf32, #tpu.memory_space<vmem>>, vector<1x8x64xf32>
    %118 = vector.shape_cast %117 : vector<1x8x64xf32> to vector<8x64xf32>
    %119 = vector.shape_cast %116 : vector<8x64xf32> to vector<1x8x64xf32>
    tpu.vector_store %arg6[%c1_34, %c0_35, %c0_36], %119 {strides = array<i32>} : memref<2x8x64xf32, #tpu.memory_space<vmem>>, vector<1x8x64xf32>,
    return
  }
  func.func @transform_0(%arg0: i32) -> (i32, i32, i32) {
    %c0_i32 = arith.constant 0 : i32
    %c0_i32_0 = arith.constant 0 : i32
    %c0_i32_1 = arith.constant 0 : i32
    %c0_i32_2 = arith.constant 0 : i32
    return %c0_i32, %c0_i32_0, %c0_i32_1 : i32, i32, i32
  }
  func.func @transform_1(%arg0: i32) -> (i32, i32) {
    %c0_i32 = arith.constant 0 : i32
    %c0_i32_0 = arith.constant 0 : i32
    %c0_i32_1 = arith.constant 0 : i32
    return %c0_i32, %c0_i32_0 : i32, i32
  }
  func.func @transform_2(%arg0: i32) -> (i32, i32) {
    %c0_i32 = arith.constant 0 : i32
    %c0_i32_0 = arith.constant 0 : i32
    %c0_i32_1 = arith.constant 0 : i32
    return %c0_i32, %c0_i32_0 : i32, i32
  }
  func.func @transform_3(%arg0: i32) -> (i32, i32) {
    %c0_i32 = arith.constant 0 : i32
    %c0_i32_0 = arith.constant 0 : i32
    %c0_i32_1 = arith.constant 0 : i32
    return %c0_i32, %c0_i32_0 : i32, i32
  }
  func.func @transform_4(%arg0: i32) -> (i32, i32) {
    %c0_i32 = arith.constant 0 : i32
    %c0_i32_0 = arith.constant 0 : i32
    %c0_i32_1 = arith.constant 0 : i32
    return %c0_i32, %c0_i32_0 : i32, i32
  }
  func.func @transform_5(%arg0: i32) -> (i32, i32, i32) {
    %c0_i32 = arith.constant 0 : i32
    %c0_i32_0 = arith.constant 0 : i32
    %c0_i32_1 = arith.constant 0 : i32
    %c0_i32_2 = arith.constant 0 : i32
    return %c0_i32, %c0_i32_0, %c0_i32_1 : i32, i32, i32
  }
}

</mosaic_0001>

<llo_original>
// kernel: tpu_custom_call.1
$region0: #{tpu_custom_call.1}
  #allocation0 [shape = 'u32[]', space=smem, size = 0x4, offset = 0x4, fixed_abs, tag = 'smem constant byte address 0x4 - core index']
  #allocation1 [shape = 'u32[144,128]{1,0:T(1,128)}', space=vmem, size = 0x12000, scoped, tag = 'internal scratch']
  %s0 = inlined_call_operand.vmem [shape: f32[2,8,64], index: 0, kind: input, shape index: {}]
  %s1 = inlined_call_operand.vmem [shape: bf16[128,64], index: 1, kind: input, shape index: {}]
  %s2 = inlined_call_operand.vmem [shape: f32[128,1], index: 2, kind: input, shape index: {}]
  %s3 = inlined_call_operand.vmem [shape: bf16[64,64], index: 3, kind: input, shape index: {}]
  %s4 = inlined_call_operand.vmem [shape: f32[64,1], index: 4, kind: input, shape index: {}]
  %s5 = inlined_call_operand.hbm [shape: f32[2,8,64], index: 5, kind: output, shape index: {}]
  %s6 = sld [smem:[#allocation0]]
  $region30: #{tpu_custom_call.1} parent=0
    _
  %s8 = ssub.s32 1, %s6
  %s9 = scalar_select 0, %s8, %s6
  $region1: #{tpu_custom_call.1} parent=0
    #allocation2 [shape = 'u8[8192]{0}', space=vmem, size = 0x2000, scoped, tag = 'output window, operand 0, single buffered']
    #allocation3 [shape = 's32[1]{0}', space=sflag, size = 0x4, scoped, tag = 'scoped memory for tpu_custom_call.1']
    %10 = vsyncpa [#allocation3], 0
    // Predicated region
    $region2: #{tpu_custom_call.1} parent=1 // pred_check
      _
    $region3: #{tpu_custom_call.1} parent=1 // pred_check_branch
      %12 = sbr.rel (0) target = $region5
    $region4: #{tpu_custom_call.1} parent=1 // pred_region
      _
    $region5: #{tpu_custom_call.1} parent=1 // pred_fallthru
      _
    // Predicated region
    $region6: #{tpu_custom_call.1} parent=1 // pred_check
      _
    $region7: #{tpu_custom_call.1} parent=1 // pred_check_branch
      %14 = sbr.rel (0) target = $region9
    $region8: #{tpu_custom_call.1} parent=1 // pred_region
      _
    $region9: #{tpu_custom_call.1} parent=1 // pred_fallthru
      _
    // Predicated region
    $region10: #{tpu_custom_call.1} parent=1 // pred_check
      _
    $region11: #{tpu_custom_call.1} parent=1 // pred_check_branch
      %16 = sbr.rel (0) target = $region13
    $region12: #{tpu_custom_call.1} parent=1 // pred_region
      _
    $region13: #{tpu_custom_call.1} parent=1 // pred_fallthru
      _
    // Predicated region
    $region14: #{tpu_custom_call.1} parent=1 // pred_check
      _
    $region15: #{tpu_custom_call.1} parent=1 // pred_check_branch
      %18 = sbr.rel (0) target = $region17
    $region16: #{tpu_custom_call.1} parent=1 // pred_region
      _
    $region17: #{tpu_custom_call.1} parent=1 // pred_fallthru
      _
    // Predicated region
    $region18: #{tpu_custom_call.1} parent=1 // pred_check
      _
    $region19: #{tpu_custom_call.1} parent=1 // pred_check_branch
      %20 = sbr.rel (0) target = $region21
    $region20: #{tpu_custom_call.1} parent=1 // pred_region
      _
    $region21: #{tpu_custom_call.1} parent=1 // pred_fallthru
      _
    %v22 = vld [vmem:[%s0] sm:$0xff]
    %23 = vxpose.xlu0.b32.start [1/16] %v22, 128
    %24 = vxpose.xlu0.b32.cont [2/16] 0.0, 128
    %25 = vxpose.xlu0.b32.cont [3/16] 0.0, 128
    %26 = vxpose.xlu0.b32.cont [4/16] 0.0, 128
    %27 = vxpose.xlu0.b32.cont [5/16] 0.0, 128
    %28 = vxpose.xlu0.b32.cont [6/16] 0.0, 128
    %29 = vxpose.xlu0.b32.cont [7/16] 0.0, 128
    %30 = vxpose.xlu0.b32.cont [8/16] 0.0, 128
    %31 = vxpose.xlu0.b32.cont [9/16] 0.0, 128
    %32 = vxpose.xlu0.b32.cont [10/16] 0.0, 128
    %33 = vxpose.xlu0.b32.cont [11/16] 0.0, 128
    %34 = vxpose.xlu0.b32.cont [12/16] 0.0, 128
    %35 = vxpose.xlu0.b32.cont [13/16] 0.0, 128
    %36 = vxpose.xlu0.b32.cont [14/16] 0.0, 128
    %37 = vxpose.xlu0.b32.cont [15/16] 0.0, 128
    %38 = vxpose.xlu0.b32.end [16/16] 0.0, 128
    %v39 = vpop.trf.xlu0
    %v40 = vpop.trf.xlu0
    %v41 = vpop.trf.xlu0
    %v42 = vpop.trf.xlu0
    %v43 = vpop.trf.xlu0
    %v44 = vpop.trf.xlu0
    %v45 = vpop.trf.xlu0
    %v46 = vpop.trf.xlu0
    %v47 = vpop.trf.xlu0
    %v48 = vpop.trf.xlu0
    %v49 = vpop.trf.xlu0
    %v50 = vpop.trf.xlu0
    %v51 = vpop.trf.xlu0
    %v52 = vpop.trf.xlu0
    %v53 = vpop.trf.xlu0
    %v54 = vpop.trf.xlu0
    %v55 = vpack.c.bf16 %v40, %v39
    %v56 = vpack.c.bf16 %v42, %v41
    %v57 = vpack.c.bf16 %v44, %v43
    %v58 = vpack.c.bf16 %v46, %v45
    %v59 = vld [vmem:[%s1] sm:$0xf]
    %v60 = vld [vmem:[%s1 + $0x4] sm:$0xf]
    %v61 = vld [vmem:[%s1 + $0x8] sm:$0xf]
    %v62 = vld [vmem:[%s1 + $0xc] sm:$0xf]
    %v63 = vld [vmem:[%s1 + $0x10] sm:$0xf]
    %v64 = vld [vmem:[%s1 + $0x14] sm:$0xf]
    %v65 = vld [vmem:[%s1 + $0x18] sm:$0xf]
    %v66 = vld [vmem:[%s1 + $0x1c] sm:$0xf]
    %v67 = vld [vmem:[%s1 + $0x20] sm:$0xf]
    %v68 = vld [vmem:[%s1 + $0x24] sm:$0xf]
    %v69 = vld [vmem:[%s1 + $0x28] sm:$0xf]
    %v70 = vld [vmem:[%s1 + $0x2c] sm:$0xf]
    %v71 = vld [vmem:[%s1 + $0x30] sm:$0xf]
    %v72 = vld [vmem:[%s1 + $0x34] sm:$0xf]
    %v73 = vld [vmem:[%s1 + $0x38] sm:$0xf]
    %v74 = vld [vmem:[%s1 + $0x3c] sm:$0xf]
    %v75 = vld [vmem:[%s2] sm:$0xff]
    %v76 = vld [vmem:[%s2 + $0x8] sm:$0xff]
    %v77 = vld [vmem:[%s2 + $0x10] sm:$0xff]
    %v78 = vld [vmem:[%s2 + $0x18] sm:$0xff]
    %v79 = vld [vmem:[%s2 + $0x20] sm:$0xff]
    %v80 = vld [vmem:[%s2 + $0x28] sm:$0xff]
    %v81 = vld [vmem:[%s2 + $0x30] sm:$0xff]
    %v82 = vld [vmem:[%s2 + $0x38] sm:$0xff]
    %v83 = vld [vmem:[%s2 + $0x40] sm:$0xff]
    %v84 = vld [vmem:[%s2 + $0x48] sm:$0xff]
    %v85 = vld [vmem:[%s2 + $0x50] sm:$0xff]
    %v86 = vld [vmem:[%s2 + $0x58] sm:$0xff]
    %v87 = vld [vmem:[%s2 + $0x60] sm:$0xff]
    %v88 = vld [vmem:[%s2 + $0x68] sm:$0xff]
    %v89 = vld [vmem:[%s2 + $0x70] sm:$0xff]
    %v90 = vld [vmem:[%s2 + $0x78] sm:$0xff]
    %92 = vset.pattern.permute.xlu0 0
    %93 = vperm.xlu0 %92, %v75
    %v94 = vpop.permute.xlu0 %93
    %97 = vset.pattern.permute.xlu0 0
    %98 = vperm.xlu0 %97, %v76
    %v99 = vpop.permute.xlu0 %98
    %102 = vset.pattern.permute.xlu0 0
    %103 = vperm.xlu0 %102, %v77
    %v104 = vpop.permute.xlu0 %103
    %107 = vset.pattern.permute.xlu0 0
    %108 = vperm.xlu0 %107, %v78
    %v109 = vpop.permute.xlu0 %108
    %112 = vset.pattern.permute.xlu0 0
    %113 = vperm.xlu0 %112, %v79
    %v114 = vpop.permute.xlu0 %113
    %117 = vset.pattern.permute.xlu0 0
    %118 = vperm.xlu0 %117, %v80
    %v119 = vpop.permute.xlu0 %118
    %122 = vset.pattern.permute.xlu0 0
    %123 = vperm.xlu0 %122, %v81
    %v124 = vpop.permute.xlu0 %123
    %127 = vset.pattern.permute.xlu0 0
    %128 = vperm.xlu0 %127, %v82
    %v129 = vpop.permute.xlu0 %128
    %132 = vset.pattern.permute.xlu0 0
    %133 = vperm.xlu0 %132, %v83
    %v134 = vpop.permute.xlu0 %133
    %137 = vset.pattern.permute.xlu0 0
    %138 = vperm.xlu0 %137, %v84
    %v139 = vpop.permute.xlu0 %138
    %142 = vset.pattern.permute.xlu0 0
    %143 = vperm.xlu0 %142, %v85
    %v144 = vpop.permute.xlu0 %143
    %147 = vset.pattern.permute.xlu0 0
    %148 = vperm.xlu0 %147, %v86
    %v149 = vpop.permute.xlu0 %148
    %152 = vset.pattern.permute.xlu0 0
    %153 = vperm.xlu0 %152, %v87
    %v154 = vpop.permute.xlu0 %153
    %157 = vset.pattern.permute.xlu0 0
    %158 = vperm.xlu0 %157, %v88
    %v159 = vpop.permute.xlu0 %158
    %162 = vset.pattern.permute.xlu0 0
    %163 = vperm.xlu0 %162, %v89
    %v164 = vpop.permute.xlu0 %163
    %167 = vset.pattern.permute.xlu0 0
    %168 = vperm.xlu0 %167, %v90
    %v169 = vpop.permute.xlu0 %168
    %v187 = vunpack.c.l.b16 %v59
    %v188 = vunpack.c.l.b16 %v60
    %v189 = vunpack.c.l.b16 %v61
    %v190 = vunpack.c.l.b16 %v62
    %v191 = vunpack.c.l.b16 %v63
    %v192 = vunpack.c.l.b16 %v64
    %v193 = vunpack.c.l.b16 %v65
    %v194 = vunpack.c.l.b16 %v66
    %v195 = vunpack.c.l.b16 %v67
    %v196 = vunpack.c.l.b16 %v68
    %v197 = vunpack.c.l.b16 %v69
    %v198 = vunpack.c.l.b16 %v70
    %v199 = vunpack.c.l.b16 %v71
    %v200 = vunpack.c.l.b16 %v72
    %v201 = vunpack.c.l.b16 %v73
    %v202 = vunpack.c.l.b16 %v74
    %v203 = vpack.c.b16 %v188, %v187
    %v204 = vpack.c.b16 %v190, %v189
    %v205 = vpack.c.b16 %v192, %v191
    %v206 = vpack.c.b16 %v194, %v193
    %v207 = vpack.c.b16 %v196, %v195
    %v208 = vpack.c.b16 %v198, %v197
    %v209 = vpack.c.b16 %v200, %v199
    %v210 = vpack.c.b16 %v202, %v201
    %vm211 = vcmask 523264
    %v213 = vsel %vm211, %v203, 0
    %v216 = vsel %vm211, %v204, 0
    %v219 = vsel %vm211, %v205, 0
    %v222 = vsel %vm211, %v206, 0
    %v225 = vsel %vm211, %v207, 0
    %v228 = vsel %vm211, %v208, 0
    %v231 = vsel %vm211, %v209, 0
    %v234 = vsel %vm211, %v210, 0
    %236 = vmatprep.subr.bf16.mxu0 0
    %237 = vmatpush1.bf16.msra.mxu0 %v55
    %238 = vmatprep.subr.bf16.mxu0 0
    %239 = vmatpush1.bf16.msra.mxu0 %v56
    %240 = vmatprep.subr.bf16.mxu0 0
    %241 = vmatpush1.bf16.msra.mxu0 %v57
    %242 = vmatprep.subr.bf16.mxu0 0
    %243 = vmatpush1.bf16.msra.mxu0 %v58
    %244 = vmatprep.subr.bf16.mxu0 0
    %245 = vmatpush1.bf16.msra.mxu0 0
    %246 = vmatprep.subr.bf16.mxu0 0
    %247 = vmatpush1.bf16.msra.mxu0 0
    %248 = vmatprep.subr.bf16.mxu0 0
    %249 = vmatpush1.bf16.msra.mxu0 0
    %250 = vmatprep.subr.bf16.mxu0 0
    %251 = vmatpush1.bf16.msra.mxu0 0
    %252 = vmatprep.subr.bf16.mxu0 0
    %253 = vmatpush1.bf16.msra.mxu0 0
    %254 = vmatprep.subr.bf16.mxu0 0
    %255 = vmatpush1.bf16.msra.mxu0 0
    %256 = vmatprep.subr.bf16.mxu0 0
    %257 = vmatpush1.bf16.msra.mxu0 0
    %258 = vmatprep.subr.bf16.mxu0 0
    %259 = vmatpush1.bf16.msra.mxu0 0
    %260 = vmatprep.subr.bf16.mxu0 0
    %261 = vmatpush1.bf16.msra.mxu0 0
    %262 = vmatprep.subr.bf16.mxu0 0
    %263 = vmatpush1.bf16.msra.mxu0 0
    %264 = vmatprep.subr.bf16.mxu0 0
    %265 = vmatpush1.bf16.msra.mxu0 0
    %266 = vmatprep.subr.bf16.mxu0 0
    %267 = vmatpush1.bf16.msra.mxu0 0
    %268 = vmatprep.mubr.bf16.mxu0 0
    %269 = vmatmul.mubr.bf16.gmra.mrb[0].mxu0 %v213
    %v270 = vpop.f32.mrb[0].mxu0
    %v271 = vadd.f32 %v94, %v270
    %v272 = vpop.f32.mrb[0].mxu0
    %v273 = vpop.f32.mrb[0].mxu0
    %v274 = vadd.f32 %v99, %v273
    %v275 = vpop.f32.mrb[0].mxu0
    %276 = vmatprep.mubr.bf16.mxu0 0
    %277 = vmatmul.mubr.bf16.gmra.mrb[0].mxu0 %v216
    %v278 = vpop.f32.mrb[0].mxu0
    %v279 = vadd.f32 %v104, %v278
    %v280 = vpop.f32.mrb[0].mxu0
    %v281 = vpop.f32.mrb[0].mxu0
    %v282 = vadd.f32 %v109, %v281
    %v283 = vpop.f32.mrb[0].mxu0
    %284 = vmatprep.mubr.bf16.mxu0 0
    %285 = vmatmul.mubr.bf16.gmra.mrb[0].mxu0 %v219
    %v286 = vpop.f32.mrb[0].mxu0
    %v287 = vadd.f32 %v114, %v286
    %v288 = vpop.f32.mrb[0].mxu0
    %v289 = vpop.f32.mrb[0].mxu0
    %v290 = vadd.f32 %v119, %v289
    %v291 = vpop.f32.mrb[0].mxu0
    %292 = vmatprep.mubr.bf16.mxu0 0
    %293 = vmatmul.mubr.bf16.gmra.mrb[0].mxu0 %v222
    %v294 = vpop.f32.mrb[0].mxu0
    %v295 = vadd.f32 %v124, %v294
    %v296 = vpop.f32.mrb[0].mxu0
    %v297 = vpop.f32.mrb[0].mxu0
    %v298 = vadd.f32 %v129, %v297
    %v299 = vpop.f32.mrb[0].mxu0
    %300 = vmatprep.mubr.bf16.mxu0 0
    %301 = vmatmul.mubr.bf16.gmra.mrb[0].mxu0 %v225
    %v302 = vpop.f32.mrb[0].mxu0
    %v303 = vadd.f32 %v134, %v302
    %v304 = vpop.f32.mrb[0].mxu0
    %v305 = vpop.f32.mrb[0].mxu0
    %v306 = vadd.f32 %v139, %v305
    %v307 = vpop.f32.mrb[0].mxu0
    %308 = vmatprep.mubr.bf16.mxu0 0
    %309 = vmatmul.mubr.bf16.gmra.mrb[0].mxu0 %v228
    %v310 = vpop.f32.mrb[0].mxu0
    %v311 = vadd.f32 %v144, %v310
    %v312 = vpop.f32.mrb[0].mxu0
    %v313 = vpop.f32.mrb[0].mxu0
    %v314 = vadd.f32 %v149, %v313
    %v315 = vpop.f32.mrb[0].mxu0
    %316 = vmatprep.mubr.bf16.mxu0 0
    %317 = vmatmul.mubr.bf16.gmra.mrb[0].mxu0 %v231
    %v318 = vpop.f32.mrb[0].mxu0
    %v319 = vadd.f32 %v154, %v318
    %v320 = vpop.f32.mrb[0].mxu0
    %v321 = vpop.f32.mrb[0].mxu0
    %v322 = vadd.f32 %v159, %v321
    %v323 = vpop.f32.mrb[0].mxu0
    %324 = vmatprep.mubr.bf16.mxu0 0
    %325 = vmatmul.mubr.bf16.gmra.mrb[0].mxu0 %v234
    %v326 = vpop.f32.mrb[0].mxu0
    %v327 = vadd.f32 %v164, %v326
    %v328 = vpop.f32.mrb[0].mxu0
    %v329 = vpop.f32.mrb[0].mxu0
    %v330 = vadd.f32 %v169, %v329
    %v331 = vpop.f32.mrb[0].mxu0
    %332 = vdwg.mxu0
    %333 = vxpose.xlu0.b32.start [1/16] %v271, 128
    %334 = vxpose.xlu0.b32.cont [2/16] 0.0, 128
    %335 = vxpose.xlu0.b32.cont [3/16] 0.0, 128
    %336 = vxpose.xlu0.b32.cont [4/16] 0.0, 128
    %337 = vxpose.xlu0.b32.cont [5/16] 0.0, 128
    %338 = vxpose.xlu0.b32.cont [6/16] 0.0, 128
    %339 = vxpose.xlu0.b32.cont [7/16] 0.0, 128
    %340 = vxpose.xlu0.b32.cont [8/16] 0.0, 128
    %341 = vxpose.xlu0.b32.cont [9/16] 0.0, 128
    %342 = vxpose.xlu0.b32.cont [10/16] 0.0, 128
    %343 = vxpose.xlu0.b32.cont [11/16] 0.0, 128
    %344 = vxpose.xlu0.b32.cont [12/16] 0.0, 128
    %345 = vxpose.xlu0.b32.cont [13/16] 0.0, 128
    %346 = vxpose.xlu0.b32.cont [14/16] 0.0, 128
    %347 = vxpose.xlu0.b32.cont [15/16] 0.0, 128
    %348 = vxpose.xlu0.b32.end [16/16] 0.0, 128
    %v349 = vpop.trf.xlu0
    %v350 = vpop.trf.xlu0
    %v351 = vpop.trf.xlu0
    %v352 = vpop.trf.xlu0
    %v353 = vpop.trf.xlu0
    %v354 = vpop.trf.xlu0
    %v355 = vpop.trf.xlu0
    %v356 = vpop.trf.xlu0
    %v357 = vpop.trf.xlu0
    %v358 = vpop.trf.xlu0
    %v359 = vpop.trf.xlu0
    %v360 = vpop.trf.xlu0
    %v361 = vpop.trf.xlu0
    %v362 = vpop.trf.xlu0
    %v363 = vpop.trf.xlu0
    %v364 = vpop.trf.xlu0
    %365 = vxpose.xlu0.b32.start [1/16] %v274, 128
    %366 = vxpose.xlu0.b32.cont [2/16] 0.0, 128
    %367 = vxpose.xlu0.b32.cont [3/16] 0.0, 128
    %368 = vxpose.xlu0.b32.cont [4/16] 0.0, 128
    %369 = vxpose.xlu0.b32.cont [5/16] 0.0, 128
    %370 = vxpose.xlu0.b32.cont [6/16] 0.0, 128
    %371 = vxpose.xlu0.b32.cont [7/16] 0.0, 128
    %372 = vxpose.xlu0.b32.cont [8/16] 0.0, 128
    %373 = vxpose.xlu0.b32.cont [9/16] 0.0, 128
    %374 = vxpose.xlu0.b32.cont [10/16] 0.0, 128
    %375 = vxpose.xlu0.b32.cont [11/16] 0.0, 128
    %376 = vxpose.xlu0.b32.cont [12/16] 0.0, 128
    %377 = vxpose.xlu0.b32.cont [13/16] 0.0, 128
    %378 = vxpose.xlu0.b32.cont [14/16] 0.0, 128
    %379 = vxpose.xlu0.b32.cont [15/16] 0.0, 128
    %380 = vxpose.xlu0.b32.end [16/16] 0.0, 128
    %v381 = vpop.trf.xlu0
    %v382 = vpop.trf.xlu0
    %v383 = vpop.trf.xlu0
    %v384 = vpop.trf.xlu0
    %v385 = vpop.trf.xlu0
    %v386 = vpop.trf.xlu0
    %v387 = vpop.trf.xlu0
    %v388 = vpop.trf.xlu0
    %v389 = vpop.trf.xlu0
    %v390 = vpop.trf.xlu0
    %v391 = vpop.trf.xlu0
    %v392 = vpop.trf.xlu0
    %v393 = vpop.trf.xlu0
    %v394 = vpop.trf.xlu0
    %v395 = vpop.trf.xlu0
    %v396 = vpop.trf.xlu0
    %397 = vxpose.xlu0.b32.start [1/16] %v279, 128
    %398 = vxpose.xlu0.b32.cont [2/16] 0.0, 128
    %399 = vxpose.xlu0.b32.cont [3/16] 0.0, 128
    %400 = vxpose.xlu0.b32.cont [4/16] 0.0, 128
    %401 = vxpose.xlu0.b32.cont [5/16] 0.0, 128
    %402 = vxpose.xlu0.b32.cont [6/16] 0.0, 128
    %403 = vxpose.xlu0.b32.cont [7/16] 0.0, 128
    %404 = vxpose.xlu0.b32.cont [8/16] 0.0, 128
    %405 = vxpose.xlu0.b32.cont [9/16] 0.0, 128
    %406 = vxpose.xlu0.b32.cont [10/16] 0.0, 128
    %407 = vxpose.xlu0.b32.cont [11/16] 0.0, 128
    %408 = vxpose.xlu0.b32.cont [12/16] 0.0, 128
    %409 = vxpose.xlu0.b32.cont [13/16] 0.0, 128
    %410 = vxpose.xlu0.b32.cont [14/16] 0.0, 128
    %411 = vxpose.xlu0.b32.cont [15/16] 0.0, 128
    %412 = vxpose.xlu0.b32.end [16/16] 0.0, 128
    %v413 = vpop.trf.xlu0
    %v414 = vpop.trf.xlu0
    %v415 = vpop.trf.xlu0
    %v416 = vpop.trf.xlu0
    %v417 = vpop.trf.xlu0
    %v418 = vpop.trf.xlu0
    %v419 = vpop.trf.xlu0
    %v420 = vpop.trf.xlu0
    %v421 = vpop.trf.xlu0
    %v422 = vpop.trf.xlu0
    %v423 = vpop.trf.xlu0
    %v424 = vpop.trf.xlu0
    %v425 = vpop.trf.xlu0
    %v426 = vpop.trf.xlu0
    %v427 = vpop.trf.xlu0
    %v428 = vpop.trf.xlu0
    %429 = vxpose.xlu0.b32.start [1/16] %v282, 128
    %430 = vxpose.xlu0.b32.cont [2/16] 0.0, 128
    %431 = vxpose.xlu0.b32.cont [3/16] 0.0, 128
    %432 = vxpose.xlu0.b32.cont [4/16] 0.0, 128
    %433 = vxpose.xlu0.b32.cont [5/16] 0.0, 128
    %434 = vxpose.xlu0.b32.cont [6/16] 0.0, 128
    %435 = vxpose.xlu0.b32.cont [7/16] 0.0, 128
    %436 = vxpose.xlu0.b32.cont [8/16] 0.0, 128
    %437 = vxpose.xlu0.b32.cont [9/16] 0.0, 128
    %438 = vxpose.xlu0.b32.cont [10/16] 0.0, 128
    %439 = vxpose.xlu0.b32.cont [11/16] 0.0, 128
    %440 = vxpose.xlu0.b32.cont [12/16] 0.0, 128
    %441 = vxpose.xlu0.b32.cont [13/16] 0.0, 128
    %442 = vxpose.xlu0.b32.cont [14/16] 0.0, 128
    %443 = vxpose.xlu0.b32.cont [15/16] 0.0, 128
    %444 = vxpose.xlu0.b32.end [16/16] 0.0, 128
    %v445 = vpop.trf.xlu0
    %v446 = vpop.trf.xlu0
    %v447 = vpop.trf.xlu0
    %v448 = vpop.trf.xlu0
    %v449 = vpop.trf.xlu0
    %v450 = vpop.trf.xlu0
    %v451 = vpop.trf.xlu0
    %v452 = vpop.trf.xlu0
    %v453 = vpop.trf.xlu0
    %v454 = vpop.trf.xlu0
    %v455 = vpop.trf.xlu0
    %v456 = vpop.trf.xlu0
    %v457 = vpop.trf.xlu0
    %v458 = vpop.trf.xlu0
    %v459 = vpop.trf.xlu0
    %v460 = vpop.trf.xlu0
    %461 = vxpose.xlu0.b32.start [1/16] %v287, 128
    %462 = vxpose.xlu0.b32.cont [2/16] 0.0, 128
    %463 = vxpose.xlu0.b32.cont [3/16] 0.0, 128
    %464 = vxpose.xlu0.b32.cont [4/16] 0.0, 128
    %465 = vxpose.xlu0.b32.cont [5/16] 0.0, 128
    %466 = vxpose.xlu0.b32.cont [6/16] 0.0, 128
    %467 = vxpose.xlu0.b32.cont [7/16] 0.0, 128
    %468 = vxpose.xlu0.b32.cont [8/16] 0.0, 128
    %469 = vxpose.xlu0.b32.cont [9/16] 0.0, 128
    %470 = vxpose.xlu0.b32.cont [10/16] 0.0, 128
    %471 = vxpose.xlu0.b32.cont [11/16] 0.0, 128
    %472 = vxpose.xlu0.b32.cont [12/16] 0.0, 128
    %473 = vxpose.xlu0.b32.cont [13/16] 0.0, 128
    %474 = vxpose.xlu0.b32.cont [14/16] 0.0, 128
    %475 = vxpose.xlu0.b32.cont [15/16] 0.0, 128
    %476 = vxpose.xlu0.b32.end [16/16] 0.0, 128
    %v477 = vpop.trf.xlu0
    %v478 = vpop.trf.xlu0
    %v479 = vpop.trf.xlu0
    %v480 = vpop.trf.xlu0
    %v481 = vpop.trf.xlu0
    %v482 = vpop.trf.xlu0
    %v483 = vpop.trf.xlu0
    %v484 = vpop.trf.xlu0
    %v485 = vpop.trf.xlu0
    %v486 = vpop.trf.xlu0
    %v487 = vpop.trf.xlu0
    %v488 = vpop.trf.xlu0
    %v489 = vpop.trf.xlu0
    %v490 = vpop.trf.xlu0
    %v491 = vpop.trf.xlu0
    %v492 = vpop.trf.xlu0
    %493 = vxpose.xlu0.b32.start [1/16] %v290, 128
    %494 = vxpose.xlu0.b32.cont [2/16] 0.0, 128
    %495 = vxpose.xlu0.b32.cont [3/16] 0.0, 128
    %496 = vxpose.xlu0.b32.cont [4/16] 0.0, 128
    %497 = vxpose.xlu0.b32.cont [5/16] 0.0, 128
    %498 = vxpose.xlu0.b32.cont [6/16] 0.0, 128
    %499 = vxpose.xlu0.b32.cont [7/16] 0.0, 128
    %500 = vxpose.xlu0.b32.cont [8/16] 0.0, 128
    %501 = vxpose.xlu0.b32.cont [9/16] 0.0, 128
    %502 = vxpose.xlu0.b32.cont [10/16] 0.0, 128
    %503 = vxpose.xlu0.b32.cont [11/16] 0.0, 128
    %504 = vxpose.xlu0.b32.cont [12/16] 0.0, 128
    %505 = vxpose.xlu0.b32.cont [13/16] 0.0, 128
    %506 = vxpose.xlu0.b32.cont [14/16] 0.0, 128
    %507 = vxpose.xlu0.b32.cont [15/16] 0.0, 128
    %508 = vxpose.xlu0.b32.end [16/16] 0.0, 128
    %v509 = vpop.trf.xlu0
    %v510 = vpop.trf.xlu0
    %v511 = vpop.trf.xlu0
    %v512 = vpop.trf.xlu0
    %v513 = vpop.trf.xlu0
    %v514 = vpop.trf.xlu0
    %v515 = vpop.trf.xlu0
    %v516 = vpop.trf.xlu0
    %v517 = vpop.trf.xlu0
    %v518 = vpop.trf.xlu0
    %v519 = vpop.trf.xlu0
    %v520 = vpop.trf.xlu0
    %v521 = vpop.trf.xlu0
    %v522 = vpop.trf.xlu0
    %v523 = vpop.trf.xlu0
    %v524 = vpop.trf.xlu0
    %525 = vxpose.xlu0.b32.start [1/16] %v295, 128
    %526 = vxpose.xlu0.b32.cont [2/16] 0.0, 128
    %527 = vxpose.xlu0.b32.cont [3/16] 0.0, 128
    %528 = vxpose.xlu0.b32.cont [4/16] 0.0, 128
    %529 = vxpose.xlu0.b32.cont [5/16] 0.0, 128
    %530 = vxpose.xlu0.b32.cont [6/16] 0.0, 128
    %531 = vxpose.xlu0.b32.cont [7/16] 0.0, 128
    %532 = vxpose.xlu0.b32.cont [8/16] 0.0, 128
    %533 = vxpose.xlu0.b32.cont [9/16] 0.0, 128
    %534 = vxpose.xlu0.b32.cont [10/16] 0.0, 128
    %535 = vxpose.xlu0.b32.cont [11/16] 0.0, 128
    %536 = vxpose.xlu0.b32.cont [12/16] 0.0, 128
    %537 = vxpose.xlu0.b32.cont [13/16] 0.0, 128
    %538 = vxpose.xlu0.b32.cont [14/16] 0.0, 128
    %539 = vxpose.xlu0.b32.cont [15/16] 0.0, 128
    %540 = vxpose.xlu0.b32.end [16/16] 0.0, 128
    %v541 = vpop.trf.xlu0
    %v542 = vpop.trf.xlu0
    %v543 = vpop.trf.xlu0
    %v544 = vpop.trf.xlu0
    %v545 = vpop.trf.xlu0
    %v546 = vpop.trf.xlu0
    %v547 = vpop.trf.xlu0
    %v548 = vpop.trf.xlu0
    %v549 = vpop.trf.xlu0
    %v550 = vpop.trf.xlu0
    %v551 = vpop.trf.xlu0
    %v552 = vpop.trf.xlu0
    %v553 = vpop.trf.xlu0
    %v554 = vpop.trf.xlu0
    %v555 = vpop.trf.xlu0
    %v556 = vpop.trf.xlu0
    %557 = vxpose.xlu0.b32.start [1/16] %v298, 128
    %558 = vxpose.xlu0.b32.cont [2/16] 0.0, 128
    %559 = vxpose.xlu0.b32.cont [3/16] 0.0, 128
    %560 = vxpose.xlu0.b32.cont [4/16] 0.0, 128
    %561 = vxpose.xlu0.b32.cont [5/16] 0.0, 128
    %562 = vxpose.xlu0.b32.cont [6/16] 0.0, 128
    %563 = vxpose.xlu0.b32.cont [7/16] 0.0, 128
    %564 = vxpose.xlu0.b32.cont [8/16] 0.0, 128
    %565 = vxpose.xlu0.b32.cont [9/16] 0.0, 128
    %566 = vxpose.xlu0.b32.cont [10/16] 0.0, 128
    %567 = vxpose.xlu0.b32.cont [11/16] 0.0, 128
    %568 = vxpose.xlu0.b32.cont [12/16] 0.0, 128
    %569 = vxpose.xlu0.b32.cont [13/16] 0.0, 128
    %570 = vxpose.xlu0.b32.cont [14/16] 0.0, 128
    %571 = vxpose.xlu0.b32.cont [15/16] 0.0, 128
    %572 = vxpose.xlu0.b32.end [16/16] 0.0, 128
    %v573 = vpop.trf.xlu0
    %v574 = vpop.trf.xlu0
    %v575 = vpop.trf.xlu0
    %v576 = vpop.trf.xlu0
    %v577 = vpop.trf.xlu0
    %v578 = vpop.trf.xlu0
    %v579 = vpop.trf.xlu0
    %v580 = vpop.trf.xlu0
    %v581 = vpop.trf.xlu0
    %v582 = vpop.trf.xlu0
    %v583 = vpop.trf.xlu0
    %v584 = vpop.trf.xlu0
    %v585 = vpop.trf.xlu0
    %v586 = vpop.trf.xlu0
    %v587 = vpop.trf.xlu0
    %v588 = vpop.trf.xlu0
    %v589 = vpack.c.bf16 %v381, %v349
    %v590 = vpack.c.bf16 %v445, %v413
    %v591 = vpack.c.bf16 %v509, %v477
    %v592 = vpack.c.bf16 %v573, %v541
    %v593 = vpack.c.bf16 %v303, %v303
    %v594 = vpack.c.bf16 %v311, %v311
    %v595 = vpack.c.bf16 %v319, %v319
    %v596 = vpack.c.bf16 %v327, %v327
    %vm597 = vcmask 64512
    %v599 = vsel %vm597, %v589, 0
    %vm601 = vcmask 1043456
    %v603 = vsel %vm601, %v593, 0
    %605 = vmatprep.subr.bf16.mxu0 0
    %606 = vmatpush1.bf16.msra.mxu0 %v603
    %607 = vmatprep.subr.bf16.mxu0 0
    %608 = vmatpush1.bf16.msra.mxu0 0
    %609 = vmatprep.subr.bf16.mxu0 0
    %610 = vmatpush1.bf16.msra.mxu0 0
    %611 = vmatprep.subr.bf16.mxu0 0
    %612 = vmatpush1.bf16.msra.mxu0 0
    %613 = vmatprep.subr.bf16.mxu0 0
    %614 = vmatpush1.bf16.msra.mxu0 0
    %615 = vmatprep.subr.bf16.mxu0 0
    %616 = vmatpush1.bf16.msra.mxu0 0
    %617 = vmatprep.subr.bf16.mxu0 0
    %618 = vmatpush1.bf16.msra.mxu0 0
    %619 = vmatprep.subr.bf16.mxu0 0
    %620 = vmatpush1.bf16.msra.mxu0 0
    %621 = vmatprep.subr.bf16.mxu0 0
    %622 = vmatpush1.bf16.msra.mxu0 0
    %623 = vmatprep.subr.bf16.mxu0 0
    %624 = vmatpush1.bf16.msra.mxu0 0
    %625 = vmatprep.subr.bf16.mxu0 0
    %626 = vmatpush1.bf16.msra.mxu0 0
    %627 = vmatprep.subr.bf16.mxu0 0
    %628 = vmatpush1.bf16.msra.mxu0 0
    %629 = vmatprep.subr.bf16.mxu0 0
    %630 = vmatpush1.bf16.msra.mxu0 0
    %631 = vmatprep.subr.bf16.mxu0 0
    %632 = vmatpush1.bf16.msra.mxu0 0
    %633 = vmatprep.subr.bf16.mxu0 0
    %634 = vmatpush1.bf16.msra.mxu0 0
    %635 = vmatprep.subr.bf16.mxu0 0
    %636 = vmatpush1.bf16.msra.mxu0 0
    %637 = vmatprep.mubr.bf16.mxu0 0
    %638 = vmatmul.mubr.bf16.gmra.mrb[0].mxu0 %v599
    %v639 = vpop.f32.mrb[0].mxu0
    %v640 = vadd.f32 0.0, %v639
    %v641 = vpop.f32.mrb[0].mxu0
    %v642 = vpop.f32.mrb[0].mxu0
    %v643 = vadd.f32 0.0, %v642
    %v644 = vpop.f32.mrb[0].mxu0
    %645 = vdwg.mxu0
    %v647 = vsel %vm597, %v590, 0
    %v650 = vsel %vm601, %v594, 0
    %652 = vmatprep.subr.bf16.mxu0 0
    %653 = vmatpush1.bf16.msra.mxu0 %v650
    %654 = vmatprep.subr.bf16.mxu0 0
    %655 = vmatpush1.bf16.msra.mxu0 0
    %656 = vmatprep.subr.bf16.mxu0 0
    %657 = vmatpush1.bf16.msra.mxu0 0
    %658 = vmatprep.subr.bf16.mxu0 0
    %659 = vmatpush1.bf16.msra.mxu0 0
    %660 = vmatprep.subr.bf16.mxu0 0
    %661 = vmatpush1.bf16.msra.mxu0 0
    %662 = vmatprep.subr.bf16.mxu0 0
    %663 = vmatpush1.bf16.msra.mxu0 0
    %664 = vmatprep.subr.bf16.mxu0 0
    %665 = vmatpush1.bf16.msra.mxu0 0
    %666 = vmatprep.subr.bf16.mxu0 0
    %667 = vmatpush1.bf16.msra.mxu0 0
    %668 = vmatprep.subr.bf16.mxu0 0
    %669 = vmatpush1.bf16.msra.mxu0 0
    %670 = vmatprep.subr.bf16.mxu0 0
    %671 = vmatpush1.bf16.msra.mxu0 0
    %672 = vmatprep.subr.bf16.mxu0 0
    %673 = vmatpush1.bf16.msra.mxu0 0
    %674 = vmatprep.subr.bf16.mxu0 0
    %675 = vmatpush1.bf16.msra.mxu0 0
    %676 = vmatprep.subr.bf16.mxu0 0
    %677 = vmatpush1.bf16.msra.mxu0 0
    %678 = vmatprep.subr.bf16.mxu0 0
    %679 = vmatpush1.bf16.msra.mxu0 0
    %680 = vmatprep.subr.bf16.mxu0 0
    %681 = vmatpush1.bf16.msra.mxu0 0
    %682 = vmatprep.subr.bf16.mxu0 0
    %683 = vmatpush1.bf16.msra.mxu0 0
    %684 = vmatprep.mubr.bf16.mxu0 0
    %685 = vmatmul.mubr.bf16.gmra.mrb[0].mxu0 %v647
    %v686 = vpop.f32.mrb[0].mxu0
    %v687 = vadd.f32 0.0, %v686
    %v688 = vpop.f32.mrb[0].mxu0
    %v689 = vpop.f32.mrb[0].mxu0
    %v690 = vadd.f32 0.0, %v689
    %v691 = vpop.f32.mrb[0].mxu0
    %692 = vdwg.mxu0
    %v694 = vsel %vm597, %v591, 0
    %v697 = vsel %vm601, %v595, 0
    %699 = vmatprep.subr.bf16.mxu0 0
    %700 = vmatpush1.bf16.msra.mxu0 %v697
    %701 = vmatprep.subr.bf16.mxu0 0
    %702 = vmatpush1.bf16.msra.mxu0 0
    %703 = vmatprep.subr.bf16.mxu0 0
    %704 = vmatpush1.bf16.msra.mxu0 0
    %705 = vmatprep.subr.bf16.mxu0 0
    %706 = vmatpush1.bf16.msra.mxu0 0
    %707 = vmatprep.subr.bf16.mxu0 0
    %708 = vmatpush1.bf16.msra.mxu0 0
    %709 = vmatprep.subr.bf16.mxu0 0
    %710 = vmatpush1.bf16.msra.mxu0 0
    %711 = vmatprep.subr.bf16.mxu0 0
    %712 = vmatpush1.bf16.msra.mxu0 0
    %713 = vmatprep.subr.bf16.mxu0 0
    %714 = vmatpush1.bf16.msra.mxu0 0
    %715 = vmatprep.subr.bf16.mxu0 0
    %716 = vmatpush1.bf16.msra.mxu0 0
    %717 = vmatprep.subr.bf16.mxu0 0
    %718 = vmatpush1.bf16.msra.mxu0 0
    %719 = vmatprep.subr.bf16.mxu0 0
    %720 = vmatpush1.bf16.msra.mxu0 0
    %721 = vmatprep.subr.bf16.mxu0 0
    %722 = vmatpush1.bf16.msra.mxu0 0
    %723 = vmatprep.subr.bf16.mxu0 0
    %724 = vmatpush1.bf16.msra.mxu0 0
    %725 = vmatprep.subr.bf16.mxu0 0
    %726 = vmatpush1.bf16.msra.mxu0 0
    %727 = vmatprep.subr.bf16.mxu0 0
    %728 = vmatpush1.bf16.msra.mxu0 0
    %729 = vmatprep.subr.bf16.mxu0 0
    %730 = vmatpush1.bf16.msra.mxu0 0
    %731 = vmatprep.mubr.bf16.mxu0 0
    %732 = vmatmul.mubr.bf16.gmra.mrb[0].mxu0 %v694
    %v733 = vpop.f32.mrb[0].mxu0
    %v734 = vadd.f32 0.0, %v733
    %v735 = vpop.f32.mrb[0].mxu0
    %v736 = vpop.f32.mrb[0].mxu0
    %v737 = vadd.f32 0.0, %v736
    %v738 = vpop.f32.mrb[0].mxu0
    %739 = vdwg.mxu0
    %v741 = vsel %vm597, %v592, 0
    %v744 = vsel %vm601, %v596, 0
    %746 = vmatprep.subr.bf16.mxu0 0
    %747 = vmatpush1.bf16.msra.mxu0 %v744
    %748 = vmatprep.subr.bf16.mxu0 0
    %749 = vmatpush1.bf16.msra.mxu0 0
    %750 = vmatprep.subr.bf16.mxu0 0
    %751 = vmatpush1.bf16.msra.mxu0 0
    %752 = vmatprep.subr.bf16.mxu0 0
    %753 = vmatpush1.bf16.msra.mxu0 0
    %754 = vmatprep.subr.bf16.mxu0 0
    %755 = vmatpush1.bf16.msra.mxu0 0
    %756 = vmatprep.subr.bf16.mxu0 0
    %757 = vmatpush1.bf16.msra.mxu0 0
    %758 = vmatprep.subr.bf16.mxu0 0
    %759 = vmatpush1.bf16.msra.mxu0 0
    %760 = vmatprep.subr.bf16.mxu0 0
    %761 = vmatpush1.bf16.msra.mxu0 0
    %762 = vmatprep.subr.bf16.mxu0 0
    %763 = vmatpush1.bf16.msra.mxu0 0
    %764 = vmatprep.subr.bf16.mxu0 0
    %765 = vmatpush1.bf16.msra.mxu0 0
    %766 = vmatprep.subr.bf16.mxu0 0
    %767 = vmatpush1.bf16.msra.mxu0 0
    %768 = vmatprep.subr.bf16.mxu0 0
    %769 = vmatpush1.bf16.msra.mxu0 0
    %770 = vmatprep.subr.bf16.mxu0 0
    %771 = vmatpush1.bf16.msra.mxu0 0
    %772 = vmatprep.subr.bf16.mxu0 0
    %773 = vmatpush1.bf16.msra.mxu0 0
    %774 = vmatprep.subr.bf16.mxu0 0
    %775 = vmatpush1.bf16.msra.mxu0 0
    %776 = vmatprep.subr.bf16.mxu0 0
    %777 = vmatpush1.bf16.msra.mxu0 0
    %778 = vmatprep.mubr.bf16.mxu0 0
    %779 = vmatmul.mubr.bf16.gmra.mrb[0].mxu0 %v741
    %v780 = vpop.f32.mrb[0].mxu0
    %v781 = vadd.f32 0.0, %v780
    %v782 = vpop.f32.mrb[0].mxu0
    %v783 = vpop.f32.mrb[0].mxu0
    %v784 = vadd.f32 0.0, %v783
    %v785 = vpop.f32.mrb[0].mxu0
    %786 = vdwg.mxu0
    %v787 = vsel %vm597, %v640, -inf
    %788 = vmax.xlane.f32.xlu0 %v787
    %v789 = vpop.xlane.xlu0 %788
    %v790 = vsel %vm597, %v643, -inf
    %791 = vmax.xlane.f32.xlu0 %v790
    %v792 = vpop.xlane.xlu0 %791
    %v793 = vsel %vm597, %v687, -inf
    %794 = vmax.xlane.f32.xlu0 %v793
    %v795 = vpop.xlane.xlu0 %794
    %v796 = vsel %vm597, %v690, -inf
    %797 = vmax.xlane.f32.xlu0 %v796
    %v798 = vpop.xlane.xlu0 %797
    %v799 = vsel %vm597, %v734, -inf
    %800 = vmax.xlane.f32.xlu0 %v799
    %v801 = vpop.xlane.xlu0 %800
    %v802 = vsel %vm597, %v737, -inf
    %803 = vmax.xlane.f32.xlu0 %v802
    %v804 = vpop.xlane.xlu0 %803
    %v805 = vsel %vm597, %v781, -inf
    %806 = vmax.xlane.f32.xlu0 %v805
    %v807 = vpop.xlane.xlu0 %806
    %v808 = vsel %vm597, %v784, -inf
    %809 = vmax.xlane.f32.xlu0 %v808
    %v810 = vpop.xlane.xlu0 %809
    %v811 = vsub.f32 %v640, %v789
    %v812 = vsub.f32 %v643, %v792
    %v813 = vsub.f32 %v687, %v795
    %v814 = vsub.f32 %v690, %v798
    %v815 = vsub.f32 %v734, %v801
    %v816 = vsub.f32 %v737, %v804
    %v817 = vsub.f32 %v781, %v807
    %v818 = vsub.f32 %v784, %v810
    %v819 = vmul.f32 %v811, 1.442695
    %v820 = vpow.pop %v819
    %v821 = vmul.f32 %v812, 1.442695
    %v822 = vpow.pop %v821
    %v823 = vmul.f32 %v813, 1.442695
    %v824 = vpow.pop %v823
    %v825 = vmul.f32 %v814, 1.442695
    %v826 = vpow.pop %v825
    %v827 = vmul.f32 %v815, 1.442695
    %v828 = vpow.pop %v827
    %v829 = vmul.f32 %v816, 1.442695
    %v830 = vpow.pop %v829
    %v831 = vmul.f32 %v817, 1.442695
    %v832 = vpow.pop %v831
    %v833 = vmul.f32 %v818, 1.442695
    %v834 = vpow.pop %v833
    %v835 = vsel %vm597, %v820, 0.0
    %836 = vadd.xlane.f32.xlu0 %v835
    %v837 = vpop.xlane.xlu0 %836
    %v838 = vsel %vm597, %v822, 0.0
    %839 = vadd.xlane.f32.xlu0 %v838
    %v840 = vpop.xlane.xlu0 %839
    %v841 = vsel %vm597, %v824, 0.0
    %842 = vadd.xlane.f32.xlu0 %v841
    %v843 = vpop.xlane.xlu0 %842
    %v844 = vsel %vm597, %v826, 0.0
    %845 = vadd.xlane.f32.xlu0 %v844
    %v846 = vpop.xlane.xlu0 %845
    %v847 = vsel %vm597, %v828, 0.0
    %848 = vadd.xlane.f32.xlu0 %v847
    %v849 = vpop.xlane.xlu0 %848
    %v850 = vsel %vm597, %v830, 0.0
    %851 = vadd.xlane.f32.xlu0 %v850
    %v852 = vpop.xlane.xlu0 %851
    %v853 = vsel %vm597, %v832, 0.0
    %854 = vadd.xlane.f32.xlu0 %v853
    %v855 = vpop.xlane.xlu0 %854
    %v856 = vsel %vm597, %v834, 0.0
    %857 = vadd.xlane.f32.xlu0 %v856
    %v858 = vpop.xlane.xlu0 %857
    %v859 = vpack.c.bf16 %v306, %v306
    %v860 = vpack.c.bf16 %v314, %v314
    %v861 = vpack.c.bf16 %v322, %v322
    %v862 = vpack.c.bf16 %v330, %v330
    %v863 = vpack.c.bf16 %v822, %v820
    %v864 = vpack.c.bf16 %v826, %v824
    %v865 = vpack.c.bf16 %v830, %v828
    %v866 = vpack.c.bf16 %v834, %v832
    %v868 = vsel %vm597, %v859, 0
    %v871 = vsel %vm597, %v863, 0
    %873 = vmatprep.subr.bf16.mxu0 0
    %874 = vmatpush1.bf16.xpose.msra.mxu0 %v871
    %875 = vmatprep.subr.bf16.mxu0 0
    %876 = vmatpush1.bf16.xpose.msra.mxu0 0
    %877 = vmatprep.subr.bf16.mxu0 0
    %878 = vmatpush1.bf16.xpose.msra.mxu0 0
    %879 = vmatprep.subr.bf16.mxu0 0
    %880 = vmatpush1.bf16.xpose.msra.mxu0 0
    %881 = vmatprep.subr.bf16.mxu0 0
    %882 = vmatpush1.bf16.xpose.msra.mxu0 0
    %883 = vmatprep.subr.bf16.mxu0 0
    %884 = vmatpush1.bf16.xpose.msra.mxu0 0
    %885 = vmatprep.subr.bf16.mxu0 0
    %886 = vmatpush1.bf16.xpose.msra.mxu0 0
    %887 = vmatprep.subr.bf16.mxu0 0
    %888 = vmatpush1.bf16.xpose.msra.mxu0 0
    %889 = vmatprep.subr.bf16.mxu0 0
    %890 = vmatpush1.bf16.xpose.msra.mxu0 0
    %891 = vmatprep.subr.bf16.mxu0 0
    %892 = vmatpush1.bf16.xpose.msra.mxu0 0
    %893 = vmatprep.subr.bf16.mxu0 0
    %894 = vmatpush1.bf16.xpose.msra.mxu0 0
    %895 = vmatprep.subr.bf16.mxu0 0
    %896 = vmatpush1.bf16.xpose.msra.mxu0 0
    %897 = vmatprep.subr.bf16.mxu0 0
    %898 = vmatpush1.bf16.xpose.msra.mxu0 0
    %899 = vmatprep.subr.bf16.mxu0 0
    %900 = vmatpush1.bf16.xpose.msra.mxu0 0
    %901 = vmatprep.subr.bf16.mxu0 0
    %902 = vmatpush1.bf16.xpose.msra.mxu0 0
    %903 = vmatprep.subr.bf16.mxu0 0
    %904 = vmatpush1.bf16.xpose.msra.mxu0 0
    %905 = vmatprep.mubr.bf16.mxu0 0
    %906 = vmatmul.mubr.bf16.gmra.mrb[0].mxu0 %v868
    %v907 = vpop.f32.mrb[0].mxu0
    %v908 = vadd.f32 0.0, %v907
    %v909 = vpop.f32.mrb[0].mxu0
    %v910 = vpop.f32.mrb[0].mxu0
    %v911 = vpop.f32.mrb[0].mxu0
    %912 = vdwg.mxu0
    %v914 = vsel %vm597, %v860, 0
    %v917 = vsel %vm597, %v864, 0
    %919 = vmatprep.subr.bf16.mxu0 0
    %920 = vmatpush1.bf16.xpose.msra.mxu0 %v917
    %921 = vmatprep.subr.bf16.mxu0 0
    %922 = vmatpush1.bf16.xpose.msra.mxu0 0
    %923 = vmatprep.subr.bf16.mxu0 0
    %924 = vmatpush1.bf16.xpose.msra.mxu0 0
    %925 = vmatprep.subr.bf16.mxu0 0
    %926 = vmatpush1.bf16.xpose.msra.mxu0 0
    %927 = vmatprep.subr.bf16.mxu0 0
    %928 = vmatpush1.bf16.xpose.msra.mxu0 0
    %929 = vmatprep.subr.bf16.mxu0 0
    %930 = vmatpush1.bf16.xpose.msra.mxu0 0
    %931 = vmatprep.subr.bf16.mxu0 0
    %932 = vmatpush1.bf16.xpose.msra.mxu0 0
    %933 = vmatprep.subr.bf16.mxu0 0
    %934 = vmatpush1.bf16.xpose.msra.mxu0 0
    %935 = vmatprep.subr.bf16.mxu0 0
    %936 = vmatpush1.bf16.xpose.msra.mxu0 0
    %937 = vmatprep.subr.bf16.mxu0 0
    %938 = vmatpush1.bf16.xpose.msra.mxu0 0
    %939 = vmatprep.subr.bf16.mxu0 0
    %940 = vmatpush1.bf16.xpose.msra.mxu0 0
    %941 = vmatprep.subr.bf16.mxu0 0
    %942 = vmatpush1.bf16.xpose.msra.mxu0 0
    %943 = vmatprep.subr.bf16.mxu0 0
    %944 = vmatpush1.bf16.xpose.msra.mxu0 0
    %945 = vmatprep.subr.bf16.mxu0 0
    %946 = vmatpush1.bf16.xpose.msra.mxu0 0
    %947 = vmatprep.subr.bf16.mxu0 0
    %948 = vmatpush1.bf16.xpose.msra.mxu0 0
    %949 = vmatprep.subr.bf16.mxu0 0
    %950 = vmatpush1.bf16.xpose.msra.mxu0 0
    %951 = vmatprep.mubr.bf16.mxu0 0
    %952 = vmatmul.mubr.bf16.gmra.mrb[0].mxu0 %v914
    %v953 = vpop.f32.mrb[0].mxu0
    %v954 = vadd.f32 0.0, %v953
    %v955 = vpop.f32.mrb[0].mxu0
    %v956 = vpop.f32.mrb[0].mxu0
    %v957 = vpop.f32.mrb[0].mxu0
    %958 = vdwg.mxu0
    %v960 = vsel %vm597, %v861, 0
    %v963 = vsel %vm597, %v865, 0
    %965 = vmatprep.subr.bf16.mxu0 0
    %966 = vmatpush1.bf16.xpose.msra.mxu0 %v963
    %967 = vmatprep.subr.bf16.mxu0 0
    %968 = vmatpush1.bf16.xpose.msra.mxu0 0
    %969 = vmatprep.subr.bf16.mxu0 0
    %970 = vmatpush1.bf16.xpose.msra.mxu0 0
    %971 = vmatprep.subr.bf16.mxu0 0
    %972 = vmatpush1.bf16.xpose.msra.mxu0 0
    %973 = vmatprep.subr.bf16.mxu0 0
    %974 = vmatpush1.bf16.xpose.msra.mxu0 0
    %975 = vmatprep.subr.bf16.mxu0 0
    %976 = vmatpush1.bf16.xpose.msra.mxu0 0
    %977 = vmatprep.subr.bf16.mxu0 0
    %978 = vmatpush1.bf16.xpose.msra.mxu0 0
    %979 = vmatprep.subr.bf16.mxu0 0
    %980 = vmatpush1.bf16.xpose.msra.mxu0 0
    %981 = vmatprep.subr.bf16.mxu0 0
    %982 = vmatpush1.bf16.xpose.msra.mxu0 0
    %983 = vmatprep.subr.bf16.mxu0 0
    %984 = vmatpush1.bf16.xpose.msra.mxu0 0
    %985 = vmatprep.subr.bf16.mxu0 0
    %986 = vmatpush1.bf16.xpose.msra.mxu0 0
    %987 = vmatprep.subr.bf16.mxu0 0
    %988 = vmatpush1.bf16.xpose.msra.mxu0 0
    %989 = vmatprep.subr.bf16.mxu0 0
    %990 = vmatpush1.bf16.xpose.msra.mxu0 0
    %991 = vmatprep.subr.bf16.mxu0 0
    %992 = vmatpush1.bf16.xpose.msra.mxu0 0
    %993 = vmatprep.subr.bf16.mxu0 0
    %994 = vmatpush1.bf16.xpose.msra.mxu0 0
    %995 = vmatprep.subr.bf16.mxu0 0
    %996 = vmatpush1.bf16.xpose.msra.mxu0 0
    %997 = vmatprep.mubr.bf16.mxu0 0
    %998 = vmatmul.mubr.bf16.gmra.mrb[0].mxu0 %v960
    %v999 = vpop.f32.mrb[0].mxu0
    %v1000 = vadd.f32 0.0, %v999
    %v1001 = vpop.f32.mrb[0].mxu0
    %v1002 = vpop.f32.mrb[0].mxu0
    %v1003 = vpop.f32.mrb[0].mxu0
    %1004 = vdwg.mxu0
    %v1006 = vsel %vm597, %v862, 0
    %v1009 = vsel %vm597, %v866, 0
    %1011 = vmatprep.subr.bf16.mxu0 0
    %1012 = vmatpush1.bf16.xpose.msra.mxu0 %v1009
    %1013 = vmatprep.subr.bf16.mxu0 0
    %1014 = vmatpush1.bf16.xpose.msra.mxu0 0
    %1015 = vmatprep.subr.bf16.mxu0 0
    %1016 = vmatpush1.bf16.xpose.msra.mxu0 0
    %1017 = vmatprep.subr.bf16.mxu0 0
    %1018 = vmatpush1.bf16.xpose.msra.mxu0 0
    %1019 = vmatprep.subr.bf16.mxu0 0
    %1020 = vmatpush1.bf16.xpose.msra.mxu0 0
    %1021 = vmatprep.subr.bf16.mxu0 0
    %1022 = vmatpush1.bf16.xpose.msra.mxu0 0
    %1023 = vmatprep.subr.bf16.mxu0 0
    %1024 = vmatpush1.bf16.xpose.msra.mxu0 0
    %1025 = vmatprep.subr.bf16.mxu0 0
    %1026 = vmatpush1.bf16.xpose.msra.mxu0 0
    %1027 = vmatprep.subr.bf16.mxu0 0
    %1028 = vmatpush1.bf16.xpose.msra.mxu0 0
    %1029 = vmatprep.subr.bf16.mxu0 0
    %1030 = vmatpush1.bf16.xpose.msra.mxu0 0
    %1031 = vmatprep.subr.bf16.mxu0 0
    %1032 = vmatpush1.bf16.xpose.msra.mxu0 0
    %1033 = vmatprep.subr.bf16.mxu0 0
    %1034 = vmatpush1.bf16.xpose.msra.mxu0 0
    %1035 = vmatprep.subr.bf16.mxu0 0
    %1036 = vmatpush1.bf16.xpose.msra.mxu0 0
    %1037 = vmatprep.subr.bf16.mxu0 0
    %1038 = vmatpush1.bf16.xpose.msra.mxu0 0
    %1039 = vmatprep.subr.bf16.mxu0 0
    %1040 = vmatpush1.bf16.xpose.msra.mxu0 0
    %1041 = vmatprep.subr.bf16.mxu0 0
    %1042 = vmatpush1.bf16.xpose.msra.mxu0 0
    %1043 = vmatprep.mubr.bf16.mxu0 0
    %1044 = vmatmul.mubr.bf16.gmra.mrb[0].mxu0 %v1006
    %v1045 = vpop.f32.mrb[0].mxu0
    %v1046 = vadd.f32 0.0, %v1045
    %v1047 = vpop.f32.mrb[0].mxu0
    %v1048 = vpop.f32.mrb[0].mxu0
    %v1049 = vpop.f32.mrb[0].mxu0
    %1050 = vdwg.mxu0
    %v1051 = vrcp.pop %v837
    %v1052 = vrcp.pop %v840
    %v1053 = vrcp.pop %v843
    %v1054 = vrcp.pop %v846
    %v1055 = vrcp.pop %v849
    %v1056 = vrcp.pop %v852
    %v1057 = vrcp.pop %v855
    %v1058 = vrcp.pop %v858
    %v1067 = vlaneseq
    %v1068 = vand.u32 %v1067, 127
    %v1069 = vlaneseq
    %v1070 = vshrl.u32 %v1069, 7
    %v1071 = vsub.s32 %v1068, %v1070
    %v1072 = vrot.slane %v1051, %v1071
    %v1073 = vadd.s32 %v1068, 4294967288
    %v1074 = vlaneseq
    %v1075 = vshrl.u32 %v1074, 7
    %v1076 = vsub.s32 %v1073, %v1075
    %v1077 = vrot.slane %v1052, %v1076
    %vm1078 = vcmask 130112
    %v1079 = vsel %vm1078, %v1077, %v1072
    %v1080 = vlaneseq
    %v1081 = vshrl.u32 %v1080, 7
    %v1082 = vsub.s32 %v1068, %v1081
    %v1083 = vrot.slane %v1053, %v1082
    %v1084 = vlaneseq
    %v1085 = vshrl.u32 %v1084, 7
    %v1086 = vsub.s32 %v1073, %v1085
    %v1087 = vrot.slane %v1054, %v1086
    %v1088 = vsel %vm1078, %v1087, %v1083
    %v1089 = vlaneseq
    %v1090 = vshrl.u32 %v1089, 7
    %v1091 = vsub.s32 %v1068, %v1090
    %v1092 = vrot.slane %v1055, %v1091
    %v1093 = vlaneseq
    %v1094 = vshrl.u32 %v1093, 7
    %v1095 = vsub.s32 %v1073, %v1094
    %v1096 = vrot.slane %v1056, %v1095
    %v1097 = vsel %vm1078, %v1096, %v1092
    %v1098 = vlaneseq
    %v1099 = vshrl.u32 %v1098, 7
    %v1100 = vsub.s32 %v1068, %v1099
    %v1101 = vrot.slane %v1057, %v1100
    %v1102 = vlaneseq
    %v1103 = vshrl.u32 %v1102, 7
    %v1104 = vsub.s32 %v1073, %v1103
    %v1105 = vrot.slane %v1058, %v1104
    %v1106 = vsel %vm1078, %v1105, %v1101
    %vm1107 = vcmask 1042434
    %v1108 = vsel %vm1107, %v1079, %v1079
    %vm1109 = vcmask 1043459
    %v1110 = vsel %vm1109, %v1079, %v1108
    %vm1111 = vcmask 1044484
    %v1112 = vsel %vm1111, %v1079, %v1110
    %vm1113 = vcmask 1045509
    %v1114 = vsel %vm1113, %v1079, %v1112
    %vm1115 = vcmask 1046534
    %v1116 = vsel %vm1115, %v1079, %v1114
    %vm1117 = vcmask 1047559
    %v1118 = vsel %vm1117, %v1079, %v1116
    %v1119 = vsel %vm1107, %v1088, %v1088
    %v1120 = vsel %vm1109, %v1088, %v1119
    %v1121 = vsel %vm1111, %v1088, %v1120
    %v1122 = vsel %vm1113, %v1088, %v1121
    %v1123 = vsel %vm1115, %v1088, %v1122
    %v1124 = vsel %vm1117, %v1088, %v1123
    %v1125 = vsel %vm1107, %v1097, %v1097
    %v1126 = vsel %vm1109, %v1097, %v1125
    %v1127 = vsel %vm1111, %v1097, %v1126
    %v1128 = vsel %vm1113, %v1097, %v1127
    %v1129 = vsel %vm1115, %v1097, %v1128
    %v1130 = vsel %vm1117, %v1097, %v1129
    %v1131 = vsel %vm1107, %v1106, %v1106
    %v1132 = vsel %vm1109, %v1106, %v1131
    %v1133 = vsel %vm1111, %v1106, %v1132
    %v1134 = vsel %vm1113, %v1106, %v1133
    %v1135 = vsel %vm1115, %v1106, %v1134
    %v1136 = vsel %vm1117, %v1106, %v1135
    %v1141 = vmul.f32 %v908, %v1118
    %v1142 = vmul.f32 %v954, %v1124
    %v1143 = vmul.f32 %v1000, %v1130
    %v1144 = vmul.f32 %v1046, %v1136
    %1146 = vrot.lane.b32.xlu0 %v1141, 120
    %v1147 = vpop.permute.xlu0 %1146
    %1150 = vrot.lane.b32.xlu0 %v1142, 120
    %v1151 = vpop.permute.xlu0 %1150
    %1154 = vrot.lane.b32.xlu0 %v1143, 120
    %v1155 = vpop.permute.xlu0 %1154
    %1158 = vrot.lane.b32.xlu0 %v1144, 120
    %v1159 = vpop.permute.xlu0 %1158
    %v1161 = vld [vmem:[%s3] sm:$0xf]
    %v1162 = vld [vmem:[%s3 + $0x4] sm:$0xf]
    %v1163 = vld [vmem:[%s3 + $0x8] sm:$0xf]
    %v1164 = vld [vmem:[%s3 + $0xc] sm:$0xf]
    %v1165 = vld [vmem:[%s3 + $0x10] sm:$0xf]
    %v1166 = vld [vmem:[%s3 + $0x14] sm:$0xf]
    %v1167 = vld [vmem:[%s3 + $0x18] sm:$0xf]
    %v1168 = vld [vmem:[%s3 + $0x1c] sm:$0xf]
    %v1169 = vpack.c.bf16 %v1147, %v1141
    %v1170 = vpack.c.bf16 %v1151, %v1142
    %v1171 = vpack.c.bf16 %v1155, %v1143
    %v1172 = vpack.c.bf16 %v1159, %v1144
    %v1173 = vld [vmem:[%s4] sm:$0xff]
    %v1174 = vld [vmem:[%s4 + $0x8] sm:$0xff]
    %v1175 = vld [vmem:[%s4 + $0x10] sm:$0xff]
    %v1176 = vld [vmem:[%s4 + $0x18] sm:$0xff]
    %v1177 = vld [vmem:[%s4 + $0x20] sm:$0xff]
    %v1178 = vld [vmem:[%s4 + $0x28] sm:$0xff]
    %v1179 = vld [vmem:[%s4 + $0x30] sm:$0xff]
    %v1180 = vld [vmem:[%s4 + $0x38] sm:$0xff]
    %1182 = vset.pattern.permute.xlu0 0
    %1183 = vperm.xlu0 %1182, %v1173
    %v1184 = vpop.permute.xlu0 %1183
    %1187 = vset.pattern.permute.xlu0 0
    %1188 = vperm.xlu0 %1187, %v1174
    %v1189 = vpop.permute.xlu0 %1188
    %1192 = vset.pattern.permute.xlu0 0
    %1193 = vperm.xlu0 %1192, %v1175
    %v1194 = vpop.permute.xlu0 %1193
    %1197 = vset.pattern.permute.xlu0 0
    %1198 = vperm.xlu0 %1197, %v1176
    %v1199 = vpop.permute.xlu0 %1198
    %1202 = vset.pattern.permute.xlu0 0
    %1203 = vperm.xlu0 %1202, %v1177
    %v1204 = vpop.permute.xlu0 %1203
    %1207 = vset.pattern.permute.xlu0 0
    %1208 = vperm.xlu0 %1207, %v1178
    %v1209 = vpop.permute.xlu0 %1208
    %1212 = vset.pattern.permute.xlu0 0
    %1213 = vperm.xlu0 %1212, %v1179
    %v1214 = vpop.permute.xlu0 %1213
    %1217 = vset.pattern.permute.xlu0 0
    %1218 = vperm.xlu0 %1217, %v1180
    %v1219 = vpop.permute.xlu0 %1218
    %v1229 = vunpack.c.l.b16 %v1161
    %v1230 = vunpack.c.l.b16 %v1162
    %v1231 = vunpack.c.l.b16 %v1163
    %v1232 = vunpack.c.l.b16 %v1164
    %v1233 = vunpack.c.l.b16 %v1165
    %v1234 = vunpack.c.l.b16 %v1166
    %v1235 = vunpack.c.l.b16 %v1167
    %v1236 = vunpack.c.l.b16 %v1168
    %v1237 = vpack.c.b16 %v1230, %v1229
    %v1238 = vpack.c.b16 %v1232, %v1231
    %v1239 = vpack.c.b16 %v1234, %v1233
    %v1240 = vpack.c.b16 %v1236, %v1235
    %v1242 = vsel %vm211, %v1237, 0
    %v1245 = vsel %vm211, %v1238, 0
    %v1248 = vsel %vm211, %v1239, 0
    %v1251 = vsel %vm211, %v1240, 0
    %1253 = vmatprep.subr.bf16.mxu0 0
    %1254 = vmatpush1.bf16.msra.mxu0 %v1169
    %1255 = vmatprep.subr.bf16.mxu0 0
    %1256 = vmatpush1.bf16.msra.mxu0 %v1170
    %1257 = vmatprep.subr.bf16.mxu0 0
    %1258 = vmatpush1.bf16.msra.mxu0 %v1171
    %1259 = vmatprep.subr.bf16.mxu0 0
    %1260 = vmatpush1.bf16.msra.mxu0 %v1172
    %1261 = vmatprep.subr.bf16.mxu0 0
    %1262 = vmatpush1.bf16.msra.mxu0 0
    %1263 = vmatprep.subr.bf16.mxu0 0
    %1264 = vmatpush1.bf16.msra.mxu0 0
    %1265 = vmatprep.subr.bf16.mxu0 0
    %1266 = vmatpush1.bf16.msra.mxu0 0
    %1267 = vmatprep.subr.bf16.mxu0 0
    %1268 = vmatpush1.bf16.msra.mxu0 0
    %1269 = vmatprep.subr.bf16.mxu0 0
    %1270 = vmatpush1.bf16.msra.mxu0 0
    %1271 = vmatprep.subr.bf16.mxu0 0
    %1272 = vmatpush1.bf16.msra.mxu0 0
    %1273 = vmatprep.subr.bf16.mxu0 0
    %1274 = vmatpush1.bf16.msra.mxu0 0
    %1275 = vmatprep.subr.bf16.mxu0 0
    %1276 = vmatpush1.bf16.msra.mxu0 0
    %1277 = vmatprep.subr.bf16.mxu0 0
    %1278 = vmatpush1.bf16.msra.mxu0 0
    %1279 = vmatprep.subr.bf16.mxu0 0
    %1280 = vmatpush1.bf16.msra.mxu0 0
    %1281 = vmatprep.subr.bf16.mxu0 0
    %1282 = vmatpush1.bf16.msra.mxu0 0
    %1283 = vmatprep.subr.bf16.mxu0 0
    %1284 = vmatpush1.bf16.msra.mxu0 0
    %1285 = vmatprep.mubr.bf16.mxu0 0
    %1286 = vmatmul.mubr.bf16.gmra.mrb[0].mxu0 %v1242
    %v1287 = vpop.f32.mrb[0].mxu0
    %v1288 = vadd.f32 %v1184, %v1287
    %v1289 = vpop.f32.mrb[0].mxu0
    %v1290 = vpop.f32.mrb[0].mxu0
    %v1291 = vadd.f32 %v1189, %v1290
    %v1292 = vpop.f32.mrb[0].mxu0
    %1293 = vmatprep.mubr.bf16.mxu0 0
    %1294 = vmatmul.mubr.bf16.gmra.mrb[0].mxu0 %v1245
    %v1295 = vpop.f32.mrb[0].mxu0
    %v1296 = vadd.f32 %v1194, %v1295
    %v1297 = vpop.f32.mrb[0].mxu0
    %v1298 = vpop.f32.mrb[0].mxu0
    %v1299 = vadd.f32 %v1199, %v1298
    %v1300 = vpop.f32.mrb[0].mxu0
    %1301 = vmatprep.mubr.bf16.mxu0 0
    %1302 = vmatmul.mubr.bf16.gmra.mrb[0].mxu0 %v1248
    %v1303 = vpop.f32.mrb[0].mxu0
    %v1304 = vadd.f32 %v1204, %v1303
    %v1305 = vpop.f32.mrb[0].mxu0
    %v1306 = vpop.f32.mrb[0].mxu0
    %v1307 = vadd.f32 %v1209, %v1306
    %v1308 = vpop.f32.mrb[0].mxu0
    %1309 = vmatprep.mubr.bf16.mxu0 0
    %1310 = vmatmul.mubr.bf16.gmra.mrb[0].mxu0 %v1251
    %v1311 = vpop.f32.mrb[0].mxu0
    %v1312 = vadd.f32 %v1214, %v1311
    %v1313 = vpop.f32.mrb[0].mxu0
    %v1314 = vpop.f32.mrb[0].mxu0
    %v1315 = vadd.f32 %v1219, %v1314
    %v1316 = vpop.f32.mrb[0].mxu0
    %1317 = vdwg.mxu0
    %1318 = vxpose.xlu0.b32.start [1/16] %v1288, 128
    %1319 = vxpose.xlu0.b32.cont [2/16] %v1291, 128
    %1320 = vxpose.xlu0.b32.cont [3/16] %v1296, 128
    %1321 = vxpose.xlu0.b32.cont [4/16] %v1299, 128
    %1322 = vxpose.xlu0.b32.cont [5/16] %v1304, 128
    %1323 = vxpose.xlu0.b32.cont [6/16] %v1307, 128
    %1324 = vxpose.xlu0.b32.cont [7/16] %v1312, 128
    %1325 = vxpose.xlu0.b32.cont [8/16] %v1315, 128
    %1326 = vxpose.xlu0.b32.cont [9/16] 0.0, 128
    %1327 = vxpose.xlu0.b32.cont [10/16] 0.0, 128
    %1328 = vxpose.xlu0.b32.cont [11/16] 0.0, 128
    %1329 = vxpose.xlu0.b32.cont [12/16] 0.0, 128
    %1330 = vxpose.xlu0.b32.cont [13/16] 0.0, 128
    %1331 = vxpose.xlu0.b32.cont [14/16] 0.0, 128
    %1332 = vxpose.xlu0.b32.cont [15/16] 0.0, 128
    %1333 = vxpose.xlu0.b32.end [16/16] 0.0, 128
    %v1334 = vpop.trf.xlu0
    %v1335 = vpop.trf.xlu0
    %v1336 = vpop.trf.xlu0
    %v1337 = vpop.trf.xlu0
    %v1338 = vpop.trf.xlu0
    %v1339 = vpop.trf.xlu0
    %v1340 = vpop.trf.xlu0
    %v1341 = vpop.trf.xlu0
    %v1342 = vpop.trf.xlu0
    %v1343 = vpop.trf.xlu0
    %v1344 = vpop.trf.xlu0
    %v1345 = vpop.trf.xlu0
    %v1346 = vpop.trf.xlu0
    %v1347 = vpop.trf.xlu0
    %v1348 = vpop.trf.xlu0
    %v1349 = vpop.trf.xlu0
    %1350 = vst.msk [vmem:[#allocation2] sm:$0xff] %vm211, %v1334
    %s1351 = scalar_lea.vmem %s0, 8
    %v1352 = vld [vmem:[%s1351] sm:$0xff]
    %1353 = vxpose.xlu0.b32.start [1/16] %v1352, 128
    %1354 = vxpose.xlu0.b32.cont [2/16] 0.0, 128
    %1355 = vxpose.xlu0.b32.cont [3/16] 0.0, 128
    %1356 = vxpose.xlu0.b32.cont [4/16] 0.0, 128
    %1357 = vxpose.xlu0.b32.cont [5/16] 0.0, 128
    %1358 = vxpose.xlu0.b32.cont [6/16] 0.0, 128
    %1359 = vxpose.xlu0.b32.cont [7/16] 0.0, 128
    %1360 = vxpose.xlu0.b32.cont [8/16] 0.0, 128
    %1361 = vxpose.xlu0.b32.cont [9/16] 0.0, 128
    %1362 = vxpose.xlu0.b32.cont [10/16] 0.0, 128
    %1363 = vxpose.xlu0.b32.cont [11/16] 0.0, 128
    %1364 = vxpose.xlu0.b32.cont [12/16] 0.0, 128
    %1365 = vxpose.xlu0.b32.cont [13/16] 0.0, 128
    %1366 = vxpose.xlu0.b32.cont [14/16] 0.0, 128
    %1367 = vxpose.xlu0.b32.cont [15/16] 0.0, 128
    %1368 = vxpose.xlu0.b32.end [16/16] 0.0, 128
    %v1369 = vpop.trf.xlu0
    %v1370 = vpop.trf.xlu0
    %v1371 = vpop.trf.xlu0
    %v1372 = vpop.trf.xlu0
    %v1373 = vpop.trf.xlu0
    %v1374 = vpop.trf.xlu0
    %v1375 = vpop.trf.xlu0
    %v1376 = vpop.trf.xlu0
    %v1377 = vpop.trf.xlu0
    %v1378 = vpop.trf.xlu0
    %v1379 = vpop.trf.xlu0
    %v1380 = vpop.trf.xlu0
    %v1381 = vpop.trf.xlu0
    %v1382 = vpop.trf.xlu0
    %v1383 = vpop.trf.xlu0
    %v1384 = vpop.trf.xlu0
    %v1385 = vpack.c.bf16 %v1370, %v1369
    %v1386 = vpack.c.bf16 %v1372, %v1371
    %v1387 = vpack.c.bf16 %v1374, %v1373
    %v1388 = vpack.c.bf16 %v1376, %v1375
    %v1389 = vld [vmem:[%s1] sm:$0xf]
    %v1390 = vld [vmem:[%s1 + $0x4] sm:$0xf]
    %v1391 = vld [vmem:[%s1 + $0x8] sm:$0xf]
    %v1392 = vld [vmem:[%s1 + $0xc] sm:$0xf]
    %v1393 = vld [vmem:[%s1 + $0x10] sm:$0xf]
    %v1394 = vld [vmem:[%s1 + $0x14] sm:$0xf]
    %v1395 = vld [vmem:[%s1 + $0x18] sm:$0xf]
    %v1396 = vld [vmem:[%s1 + $0x1c] sm:$0xf]
    %v1397 = vld [vmem:[%s1 + $0x20] sm:$0xf]
    %v1398 = vld [vmem:[%s1 + $0x24] sm:$0xf]
    %v1399 = vld [vmem:[%s1 + $0x28] sm:$0xf]
    %v1400 = vld [vmem:[%s1 + $0x2c] sm:$0xf]
    %v1401 = vld [vmem:[%s1 + $0x30] sm:$0xf]
    %v1402 = vld [vmem:[%s1 + $0x34] sm:$0xf]
    %v1403 = vld [vmem:[%s1 + $0x38] sm:$0xf]
    %v1404 = vld [vmem:[%s1 + $0x3c] sm:$0xf]
    %v1405 = vld [vmem:[%s2] sm:$0xff]
    %v1406 = vld [vmem:[%s2 + $0x8] sm:$0xff]
    %v1407 = vld [vmem:[%s2 + $0x10] sm:$0xff]
    %v1408 = vld [vmem:[%s2 + $0x18] sm:$0xff]
    %v1409 = vld [vmem:[%s2 + $0x20] sm:$0xff]
    %v1410 = vld [vmem:[%s2 + $0x28] sm:$0xff]
    %v1411 = vld [vmem:[%s2 + $0x30] sm:$0xff]
    %v1412 = vld [vmem:[%s2 + $0x38] sm:$0xff]
    %v1413 = vld [vmem:[%s2 + $0x40] sm:$0xff]
    %v1414 = vld [vmem:[%s2 + $0x48] sm:$0xff]
    %v1415 = vld [vmem:[%s2 + $0x50] sm:$0xff]
    %v1416 = vld [vmem:[%s2 + $0x58] sm:$0xff]
    %v1417 = vld [vmem:[%s2 + $0x60] sm:$0xff]
    %v1418 = vld [vmem:[%s2 + $0x68] sm:$0xff]
    %v1419 = vld [vmem:[%s2 + $0x70] sm:$0xff]
    %v1420 = vld [vmem:[%s2 + $0x78] sm:$0xff]
    %1422 = vset.pattern.permute.xlu0 0
    %1423 = vperm.xlu0 %1422, %v1405
    %v1424 = vpop.permute.xlu0 %1423
    %1427 = vset.pattern.permute.xlu0 0
    %1428 = vperm.xlu0 %1427, %v1406
    %v1429 = vpop.permute.xlu0 %1428
    %1432 = vset.pattern.permute.xlu0 0
    %1433 = vperm.xlu0 %1432, %v1407
    %v1434 = vpop.permute.xlu0 %1433
    %1437 = vset.pattern.permute.xlu0 0
    %1438 = vperm.xlu0 %1437, %v1408
    %v1439 = vpop.permute.xlu0 %1438
    %1442 = vset.pattern.permute.xlu0 0
    %1443 = vperm.xlu0 %1442, %v1409
    %v1444 = vpop.permute.xlu0 %1443
    %1447 = vset.pattern.permute.xlu0 0
    %1448 = vperm.xlu0 %1447, %v1410
    %v1449 = vpop.permute.xlu0 %1448
    %1452 = vset.pattern.permute.xlu0 0
    %1453 = vperm.xlu0 %1452, %v1411
    %v1454 = vpop.permute.xlu0 %1453
    %1457 = vset.pattern.permute.xlu0 0
    %1458 = vperm.xlu0 %1457, %v1412
    %v1459 = vpop.permute.xlu0 %1458
    %1462 = vset.pattern.permute.xlu0 0
    %1463 = vperm.xlu0 %1462, %v1413
    %v1464 = vpop.permute.xlu0 %1463
    %1467 = vset.pattern.permute.xlu0 0
    %1468 = vperm.xlu0 %1467, %v1414
    %v1469 = vpop.permute.xlu0 %1468
    %1472 = vset.pattern.permute.xlu0 0
    %1473 = vperm.xlu0 %1472, %v1415
    %v1474 = vpop.permute.xlu0 %1473
    %1477 = vset.pattern.permute.xlu0 0
    %1478 = vperm.xlu0 %1477, %v1416
    %v1479 = vpop.permute.xlu0 %1478
    %1482 = vset.pattern.permute.xlu0 0
    %1483 = vperm.xlu0 %1482, %v1417
    %v1484 = vpop.permute.xlu0 %1483
    %1487 = vset.pattern.permute.xlu0 0
    %1488 = vperm.xlu0 %1487, %v1418
    %v1489 = vpop.permute.xlu0 %1488
    %1492 = vset.pattern.permute.xlu0 0
    %1493 = vperm.xlu0 %1492, %v1419
    %v1494 = vpop.permute.xlu0 %1493
    %1497 = vset.pattern.permute.xlu0 0
    %1498 = vperm.xlu0 %1497, %v1420
    %v1499 = vpop.permute.xlu0 %1498
    %v1517 = vunpack.c.l.b16 %v1389
    %v1518 = vunpack.c.l.b16 %v1390
    %v1519 = vunpack.c.l.b16 %v1391
    %v1520 = vunpack.c.l.b16 %v1392
    %v1521 = vunpack.c.l.b16 %v1393
    %v1522 = vunpack.c.l.b16 %v1394
    %v1523 = vunpack.c.l.b16 %v1395
    %v1524 = vunpack.c.l.b16 %v1396
    %v1525 = vunpack.c.l.b16 %v1397
    %v1526 = vunpack.c.l.b16 %v1398
    %v1527 = vunpack.c.l.b16 %v1399
    %v1528 = vunpack.c.l.b16 %v1400
    %v1529 = vunpack.c.l.b16 %v1401
    %v1530 = vunpack.c.l.b16 %v1402
    %v1531 = vunpack.c.l.b16 %v1403
    %v1532 = vunpack.c.l.b16 %v1404
    %v1533 = vpack.c.b16 %v1518, %v1517
    %v1534 = vpack.c.b16 %v1520, %v1519
    %v1535 = vpack.c.b16 %v1522, %v1521
    %v1536 = vpack.c.b16 %v1524, %v1523
    %v1537 = vpack.c.b16 %v1526, %v1525
    %v1538 = vpack.c.b16 %v1528, %v1527
    %v1539 = vpack.c.b16 %v1530, %v1529
    %v1540 = vpack.c.b16 %v1532, %v1531
    %v1542 = vsel %vm211, %v1533, 0
    %v1545 = vsel %vm211, %v1534, 0
    %v1548 = vsel %vm211, %v1535, 0
    %v1551 = vsel %vm211, %v1536, 0
    %v1554 = vsel %vm211, %v1537, 0
    %v1557 = vsel %vm211, %v1538, 0
    %v1560 = vsel %vm211, %v1539, 0
    %v1563 = vsel %vm211, %v1540, 0
    %1565 = vmatprep.subr.bf16.mxu0 0
    %1566 = vmatpush1.bf16.msra.mxu0 %v1385
    %1567 = vmatprep.subr.bf16.mxu0 0
    %1568 = vmatpush1.bf16.msra.mxu0 %v1386
    %1569 = vmatprep.subr.bf16.mxu0 0
    %1570 = vmatpush1.bf16.msra.mxu0 %v1387
    %1571 = vmatprep.subr.bf16.mxu0 0
    %1572 = vmatpush1.bf16.msra.mxu0 %v1388
    %1573 = vmatprep.subr.bf16.mxu0 0
    %1574 = vmatpush1.bf16.msra.mxu0 0
    %1575 = vmatprep.subr.bf16.mxu0 0
    %1576 = vmatpush1.bf16.msra.mxu0 0
    %1577 = vmatprep.subr.bf16.mxu0 0
    %1578 = vmatpush1.bf16.msra.mxu0 0
    %1579 = vmatprep.subr.bf16.mxu0 0
    %1580 = vmatpush1.bf16.msra.mxu0 0
    %1581 = vmatprep.subr.bf16.mxu0 0
    %1582 = vmatpush1.bf16.msra.mxu0 0
    %1583 = vmatprep.subr.bf16.mxu0 0
    %1584 = vmatpush1.bf16.msra.mxu0 0
    %1585 = vmatprep.subr.bf16.mxu0 0
    %1586 = vmatpush1.bf16.msra.mxu0 0
    %1587 = vmatprep.subr.bf16.mxu0 0
    %1588 = vmatpush1.bf16.msra.mxu0 0
    %1589 = vmatprep.subr.bf16.mxu0 0
    %1590 = vmatpush1.bf16.msra.mxu0 0
    %1591 = vmatprep.subr.bf16.mxu0 0
    %1592 = vmatpush1.bf16.msra.mxu0 0
    %1593 = vmatprep.subr.bf16.mxu0 0
    %1594 = vmatpush1.bf16.msra.mxu0 0
    %1595 = vmatprep.subr.bf16.mxu0 0
    %1596 = vmatpush1.bf16.msra.mxu0 0
    %1597 = vmatprep.mubr.bf16.mxu0 0
    %1598 = vmatmul.mubr.bf16.gmra.mrb[0].mxu0 %v1542
    %v1599 = vpop.f32.mrb[0].mxu0
    %v1600 = vadd.f32 %v1424, %v1599
    %v1601 = vpop.f32.mrb[0].mxu0
    %v1602 = vpop.f32.mrb[0].mxu0
    %v1603 = vadd.f32 %v1429, %v1602
    %v1604 = vpop.f32.mrb[0].mxu0
    %1605 = vmatprep.mubr.bf16.mxu0 0
    %1606 = vmatmul.mubr.bf16.gmra.mrb[0].mxu0 %v1545
    %v1607 = vpop.f32.mrb[0].mxu0
    %v1608 = vadd.f32 %v1434, %v1607
    %v1609 = vpop.f32.mrb[0].mxu0
    %v1610 = vpop.f32.mrb[0].mxu0
    %v1611 = vadd.f32 %v1439, %v1610
    %v1612 = vpop.f32.mrb[0].mxu0
    %1613 = vmatprep.mubr.bf16.mxu0 0
    %1614 = vmatmul.mubr.bf16.gmra.mrb[0].mxu0 %v1548
    %v1615 = vpop.f32.mrb[0].mxu0
    %v1616 = vadd.f32 %v1444, %v1615
    %v1617 = vpop.f32.mrb[0].mxu0
    %v1618 = vpop.f32.mrb[0].mxu0
    %v1619 = vadd.f32 %v1449, %v1618
    %v1620 = vpop.f32.mrb[0].mxu0
    %1621 = vmatprep.mubr.bf16.mxu0 0
    %1622 = vmatmul.mubr.bf16.gmra.mrb[0].mxu0 %v1551
    %v1623 = vpop.f32.mrb[0].mxu0
    %v1624 = vadd.f32 %v1454, %v1623
    %v1625 = vpop.f32.mrb[0].mxu0
    %v1626 = vpop.f32.mrb[0].mxu0
    %v1627 = vadd.f32 %v1459, %v1626
    %v1628 = vpop.f32.mrb[0].mxu0
    %1629 = vmatprep.mubr.bf16.mxu0 0
    %1630 = vmatmul.mubr.bf16.gmra.mrb[0].mxu0 %v1554
    %v1631 = vpop.f32.mrb[0].mxu0
    %v1632 = vadd.f32 %v1464, %v1631
    %v1633 = vpop.f32.mrb[0].mxu0
    %v1634 = vpop.f32.mrb[0].mxu0
    %v1635 = vadd.f32 %v1469, %v1634
    %v1636 = vpop.f32.mrb[0].mxu0
    %1637 = vmatprep.mubr.bf16.mxu0 0
    %1638 = vmatmul.mubr.bf16.gmra.mrb[0].mxu0 %v1557
    %v1639 = vpop.f32.mrb[0].mxu0
    %v1640 = vadd.f32 %v1474, %v1639
    %v1641 = vpop.f32.mrb[0].mxu0
    %v1642 = vpop.f32.mrb[0].mxu0
    %v1643 = vadd.f32 %v1479, %v1642
    %v1644 = vpop.f32.mrb[0].mxu0
    %1645 = vmatprep.mubr.bf16.mxu0 0
    %1646 = vmatmul.mubr.bf16.gmra.mrb[0].mxu0 %v1560
    %v1647 = vpop.f32.mrb[0].mxu0
    %v1648 = vadd.f32 %v1484, %v1647
    %v1649 = vpop.f32.mrb[0].mxu0
    %v1650 = vpop.f32.mrb[0].mxu0
    %v1651 = vadd.f32 %v1489, %v1650
    %v1652 = vpop.f32.mrb[0].mxu0
    %1653 = vmatprep.mubr.bf16.mxu0 0
    %1654 = vmatmul.mubr.bf16.gmra.mrb[0].mxu0 %v1563
    %v1655 = vpop.f32.mrb[0].mxu0
    %v1656 = vadd.f32 %v1494, %v1655
    %v1657 = vpop.f32.mrb[0].mxu0
    %v1658 = vpop.f32.mrb[0].mxu0
    %v1659 = vadd.f32 %v1499, %v1658
    %v1660 = vpop.f32.mrb[0].mxu0
    %1661 = vdwg.mxu0
    %1662 = vxpose.xlu0.b32.start [1/16] %v1600, 128
    %1663 = vxpose.xlu0.b32.cont [2/16] 0.0, 128
    %1664 = vxpose.xlu0.b32.cont [3/16] 0.0, 128
    %1665 = vxpose.xlu0.b32.cont [4/16] 0.0, 128
    %1666 = vxpose.xlu0.b32.cont [5/16] 0.0, 128
    %1667 = vxpose.xlu0.b32.cont [6/16] 0.0, 128
    %1668 = vxpose.xlu0.b32.cont [7/16] 0.0, 128
    %1669 = vxpose.xlu0.b32.cont [8/16] 0.0, 128
    %1670 = vxpose.xlu0.b32.cont [9/16] 0.0, 128
    %1671 = vxpose.xlu0.b32.cont [10/16] 0.0, 128
    %1672 = vxpose.xlu0.b32.cont [11/16] 0.0, 128
    %1673 = vxpose.xlu0.b32.cont [12/16] 0.0, 128
    %1674 = vxpose.xlu0.b32.cont [13/16] 0.0, 128
    %1675 = vxpose.xlu0.b32.cont [14/16] 0.0, 128
    %1676 = vxpose.xlu0.b32.cont [15/16] 0.0, 128
    %1677 = vxpose.xlu0.b32.end [16/16] 0.0, 128
    %v1678 = vpop.trf.xlu0
    %v1679 = vpop.trf.xlu0
    %v1680 = vpop.trf.xlu0
    %v1681 = vpop.trf.xlu0
    %v1682 = vpop.trf.xlu0
    %v1683 = vpop.trf.xlu0
    %v1684 = vpop.trf.xlu0
    %v1685 = vpop.trf.xlu0
    %v1686 = vpop.trf.xlu0
    %v1687 = vpop.trf.xlu0
    %v1688 = vpop.trf.xlu0
    %v1689 = vpop.trf.xlu0
    %v1690 = vpop.trf.xlu0
    %v1691 = vpop.trf.xlu0
    %v1692 = vpop.trf.xlu0
    %v1693 = vpop.trf.xlu0
    %1694 = vxpose.xlu0.b32.start [1/16] %v1603, 128
    %1695 = vxpose.xlu0.b32.cont [2/16] 0.0, 128
    %1696 = vxpose.xlu0.b32.cont [3/16] 0.0, 128
    %1697 = vxpose.xlu0.b32.cont [4/16] 0.0, 128
    %1698 = vxpose.xlu0.b32.cont [5/16] 0.0, 128
    %1699 = vxpose.xlu0.b32.cont [6/16] 0.0, 128
    %1700 = vxpose.xlu0.b32.cont [7/16] 0.0, 128
    %1701 = vxpose.xlu0.b32.cont [8/16] 0.0, 128
    %1702 = vxpose.xlu0.b32.cont [9/16] 0.0, 128
    %1703 = vxpose.xlu0.b32.cont [10/16] 0.0, 128
    %1704 = vxpose.xlu0.b32.cont [11/16] 0.0, 128
    %1705 = vxpose.xlu0.b32.cont [12/16] 0.0, 128
    %1706 = vxpose.xlu0.b32.cont [13/16] 0.0, 128
    %1707 = vxpose.xlu0.b32.cont [14/16] 0.0, 128
    %1708 = vxpose.xlu0.b32.cont [15/16] 0.0, 128
    %1709 = vxpose.xlu0.b32.end [16/16] 0.0, 128
    %v1710 = vpop.trf.xlu0
    %v1711 = vpop.trf.xlu0
    %v1712 = vpop.trf.xlu0
    %v1713 = vpop.trf.xlu0
    %v1714 = vpop.trf.xlu0
    %v1715 = vpop.trf.xlu0
    %v1716 = vpop.trf.xlu0
    %v1717 = vpop.trf.xlu0
    %v1718 = vpop.trf.xlu0
    %v1719 = vpop.trf.xlu0
    %v1720 = vpop.trf.xlu0
    %v1721 = vpop.trf.xlu0
    %v1722 = vpop.trf.xlu0
    %v1723 = vpop.trf.xlu0
    %v1724 = vpop.trf.xlu0
    %v1725 = vpop.trf.xlu0
    %1726 = vxpose.xlu0.b32.start [1/16] %v1608, 128
    %1727 = vxpose.xlu0.b32.cont [2/16] 0.0, 128
    %1728 = vxpose.xlu0.b32.cont [3/16] 0.0, 128
    %1729 = vxpose.xlu0.b32.cont [4/16] 0.0, 128
    %1730 = vxpose.xlu0.b32.cont [5/16] 0.0, 128
    %1731 = vxpose.xlu0.b32.cont [6/16] 0.0, 128
    %1732 = vxpose.xlu0.b32.cont [7/16] 0.0, 128
    %1733 = vxpose.xlu0.b32.cont [8/16] 0.0, 128
    %1734 = vxpose.xlu0.b32.cont [9/16] 0.0, 128
    %1735 = vxpose.xlu0.b32.cont [10/16] 0.0, 128
    %1736 = vxpose.xlu0.b32.cont [11/16] 0.0, 128
    %1737 = vxpose.xlu0.b32.cont [12/16] 0.0, 128
    %1738 = vxpose.xlu0.b32.cont [13/16] 0.0, 128
    %1739 = vxpose.xlu0.b32.cont [14/16] 0.0, 128
    %1740 = vxpose.xlu0.b32.cont [15/16] 0.0, 128
    %1741 = vxpose.xlu0.b32.end [16/16] 0.0, 128
    %v1742 = vpop.trf.xlu0
    %v1743 = vpop.trf.xlu0
    %v1744 = vpop.trf.xlu0
    %v1745 = vpop.trf.xlu0
    %v1746 = vpop.trf.xlu0
    %v1747 = vpop.trf.xlu0
    %v1748 = vpop.trf.xlu0
    %v1749 = vpop.trf.xlu0
    %v1750 = vpop.trf.xlu0
    %v1751 = vpop.trf.xlu0
    %v1752 = vpop.trf.xlu0
    %v1753 = vpop.trf.xlu0
    %v1754 = vpop.trf.xlu0
    %v1755 = vpop.trf.xlu0
    %v1756 = vpop.trf.xlu0
    %v1757 = vpop.trf.xlu0
    %1758 = vxpose.xlu0.b32.start [1/16] %v1611, 128
    %1759 = vxpose.xlu0.b32.cont [2/16] 0.0, 128
    %1760 = vxpose.xlu0.b32.cont [3/16] 0.0, 128
    %1761 = vxpose.xlu0.b32.cont [4/16] 0.0, 128
    %1762 = vxpose.xlu0.b32.cont [5/16] 0.0, 128
    %1763 = vxpose.xlu0.b32.cont [6/16] 0.0, 128
    %1764 = vxpose.xlu0.b32.cont [7/16] 0.0, 128
    %1765 = vxpose.xlu0.b32.cont [8/16] 0.0, 128
    %1766 = vxpose.xlu0.b32.cont [9/16] 0.0, 128
    %1767 = vxpose.xlu0.b32.cont [10/16] 0.0, 128
    %1768 = vxpose.xlu0.b32.cont [11/16] 0.0, 128
    %1769 = vxpose.xlu0.b32.cont [12/16] 0.0, 128
    %1770 = vxpose.xlu0.b32.cont [13/16] 0.0, 128
    %1771 = vxpose.xlu0.b32.cont [14/16] 0.0, 128
    %1772 = vxpose.xlu0.b32.cont [15/16] 0.0, 128
    %1773 = vxpose.xlu0.b32.end [16/16] 0.0, 128
    %v1774 = vpop.trf.xlu0
    %v1775 = vpop.trf.xlu0
    %v1776 = vpop.trf.xlu0
    %v1777 = vpop.trf.xlu0
    %v1778 = vpop.trf.xlu0
    %v1779 = vpop.trf.xlu0
    %v1780 = vpop.trf.xlu0
    %v1781 = vpop.trf.xlu0
    %v1782 = vpop.trf.xlu0
    %v1783 = vpop.trf.xlu0
    %v1784 = vpop.trf.xlu0
    %v1785 = vpop.trf.xlu0
    %v1786 = vpop.trf.xlu0
    %v1787 = vpop.trf.xlu0
    %v1788 = vpop.trf.xlu0
    %v1789 = vpop.trf.xlu0
    %1790 = vxpose.xlu0.b32.start [1/16] %v1616, 128
    %1791 = vxpose.xlu0.b32.cont [2/16] 0.0, 128
    %1792 = vxpose.xlu0.b32.cont [3/16] 0.0, 128
    %1793 = vxpose.xlu0.b32.cont [4/16] 0.0, 128
    %1794 = vxpose.xlu0.b32.cont [5/16] 0.0, 128
    %1795 = vxpose.xlu0.b32.cont [6/16] 0.0, 128
    %1796 = vxpose.xlu0.b32.cont [7/16] 0.0, 128
    %1797 = vxpose.xlu0.b32.cont [8/16] 0.0, 128
    %1798 = vxpose.xlu0.b32.cont [9/16] 0.0, 128
    %1799 = vxpose.xlu0.b32.cont [10/16] 0.0, 128
    %1800 = vxpose.xlu0.b32.cont [11/16] 0.0, 128
    %1801 = vxpose.xlu0.b32.cont [12/16] 0.0, 128
    %1802 = vxpose.xlu0.b32.cont [13/16] 0.0, 128
    %1803 = vxpose.xlu0.b32.cont [14/16] 0.0, 128
    %1804 = vxpose.xlu0.b32.cont [15/16] 0.0, 128
    %1805 = vxpose.xlu0.b32.end [16/16] 0.0, 128
    %v1806 = vpop.trf.xlu0
    %v1807 = vpop.trf.xlu0
    %v1808 = vpop.trf.xlu0
    %v1809 = vpop.trf.xlu0
    %v1810 = vpop.trf.xlu0
    %v1811 = vpop.trf.xlu0
    %v1812 = vpop.trf.xlu0
    %v1813 = vpop.trf.xlu0
    %v1814 = vpop.trf.xlu0
    %v1815 = vpop.trf.xlu0
    %v1816 = vpop.trf.xlu0
    %v1817 = vpop.trf.xlu0
    %v1818 = vpop.trf.xlu0
    %v1819 = vpop.trf.xlu0
    %v1820 = vpop.trf.xlu0
    %v1821 = vpop.trf.xlu0
    %1822 = vxpose.xlu0.b32.start [1/16] %v1619, 128
    %1823 = vxpose.xlu0.b32.cont [2/16] 0.0, 128
    %1824 = vxpose.xlu0.b32.cont [3/16] 0.0, 128
    %1825 = vxpose.xlu0.b32.cont [4/16] 0.0, 128
    %1826 = vxpose.xlu0.b32.cont [5/16] 0.0, 128
    %1827 = vxpose.xlu0.b32.cont [6/16] 0.0, 128
    %1828 = vxpose.xlu0.b32.cont [7/16] 0.0, 128
    %1829 = vxpose.xlu0.b32.cont [8/16] 0.0, 128
    %1830 = vxpose.xlu0.b32.cont [9/16] 0.0, 128
    %1831 = vxpose.xlu0.b32.cont [10/16] 0.0, 128
    %1832 = vxpose.xlu0.b32.cont [11/16] 0.0, 128
    %1833 = vxpose.xlu0.b32.cont [12/16] 0.0, 128
    %1834 = vxpose.xlu0.b32.cont [13/16] 0.0, 128
    %1835 = vxpose.xlu0.b32.cont [14/16] 0.0, 128
    %1836 = vxpose.xlu0.b32.cont [15/16] 0.0, 128
    %1837 = vxpose.xlu0.b32.end [16/16] 0.0, 128
    %v1838 = vpop.trf.xlu0
    %v1839 = vpop.trf.xlu0
    %v1840 = vpop.trf.xlu0
    %v1841 = vpop.trf.xlu0
    %v1842 = vpop.trf.xlu0
    %v1843 = vpop.trf.xlu0
    %v1844 = vpop.trf.xlu0
    %v1845 = vpop.trf.xlu0
    %v1846 = vpop.trf.xlu0
    %v1847 = vpop.trf.xlu0
    %v1848 = vpop.trf.xlu0
    %v1849 = vpop.trf.xlu0
    %v1850 = vpop.trf.xlu0
    %v1851 = vpop.trf.xlu0
    %v1852 = vpop.trf.xlu0
    %v1853 = vpop.trf.xlu0
    %1854 = vxpose.xlu0.b32.start [1/16] %v1624, 128
    %1855 = vxpose.xlu0.b32.cont [2/16] 0.0, 128
    %1856 = vxpose.xlu0.b32.cont [3/16] 0.0, 128
    %1857 = vxpose.xlu0.b32.cont [4/16] 0.0, 128
    %1858 = vxpose.xlu0.b32.cont [5/16] 0.0, 128
    %1859 = vxpose.xlu0.b32.cont [6/16] 0.0, 128
    %1860 = vxpose.xlu0.b32.cont [7/16] 0.0, 128
    %1861 = vxpose.xlu0.b32.cont [8/16] 0.0, 128
    %1862 = vxpose.xlu0.b32.cont [9/16] 0.0, 128
    %1863 = vxpose.xlu0.b32.cont [10/16] 0.0, 128
    %1864 = vxpose.xlu0.b32.cont [11/16] 0.0, 128
    %1865 = vxpose.xlu0.b32.cont [12/16] 0.0, 128
    %1866 = vxpose.xlu0.b32.cont [13/16] 0.0, 128
    %1867 = vxpose.xlu0.b32.cont [14/16] 0.0, 128
    %1868 = vxpose.xlu0.b32.cont [15/16] 0.0, 128
    %1869 = vxpose.xlu0.b32.end [16/16] 0.0, 128
    %v1870 = vpop.trf.xlu0
    %v1871 = vpop.trf.xlu0
    %v1872 = vpop.trf.xlu0
    %v1873 = vpop.trf.xlu0
    %v1874 = vpop.trf.xlu0
    %v1875 = vpop.trf.xlu0
    %v1876 = vpop.trf.xlu0
    %v1877 = vpop.trf.xlu0
    %v1878 = vpop.trf.xlu0
    %v1879 = vpop.trf.xlu0
    %v1880 = vpop.trf.xlu0
    %v1881 = vpop.trf.xlu0
    %v1882 = vpop.trf.xlu0
    %v1883 = vpop.trf.xlu0
    %v1884 = vpop.trf.xlu0
    %v1885 = vpop.trf.xlu0
    %1886 = vxpose.xlu0.b32.start [1/16] %v1627, 128
    %1887 = vxpose.xlu0.b32.cont [2/16] 0.0, 128
    %1888 = vxpose.xlu0.b32.cont [3/16] 0.0, 128
    %1889 = vxpose.xlu0.b32.cont [4/16] 0.0, 128
    %1890 = vxpose.xlu0.b32.cont [5/16] 0.0, 128
    %1891 = vxpose.xlu0.b32.cont [6/16] 0.0, 128
    %1892 = vxpose.xlu0.b32.cont [7/16] 0.0, 128
    %1893 = vxpose.xlu0.b32.cont [8/16] 0.0, 128
    %1894 = vxpose.xlu0.b32.cont [9/16] 0.0, 128
    %1895 = vxpose.xlu0.b32.cont [10/16] 0.0, 128
    %1896 = vxpose.xlu0.b32.cont [11/16] 0.0, 128
    %1897 = vxpose.xlu0.b32.cont [12/16] 0.0, 128
    %1898 = vxpose.xlu0.b32.cont [13/16] 0.0, 128
    %1899 = vxpose.xlu0.b32.cont [14/16] 0.0, 128
    %1900 = vxpose.xlu0.b32.cont [15/16] 0.0, 128
    %1901 = vxpose.xlu0.b32.end [16/16] 0.0, 128
    %v1902 = vpop.trf.xlu0
    %v1903 = vpop.trf.xlu0
    %v1904 = vpop.trf.xlu0
    %v1905 = vpop.trf.xlu0
    %v1906 = vpop.trf.xlu0
    %v1907 = vpop.trf.xlu0
    %v1908 = vpop.trf.xlu0
    %v1909 = vpop.trf.xlu0
    %v1910 = vpop.trf.xlu0
    %v1911 = vpop.trf.xlu0
    %v1912 = vpop.trf.xlu0
    %v1913 = vpop.trf.xlu0
    %v1914 = vpop.trf.xlu0
    %v1915 = vpop.trf.xlu0
    %v1916 = vpop.trf.xlu0
    %v1917 = vpop.trf.xlu0
    %v1918 = vpack.c.bf16 %v1710, %v1678
    %v1919 = vpack.c.bf16 %v1774, %v1742
    %v1920 = vpack.c.bf16 %v1838, %v1806
    %v1921 = vpack.c.bf16 %v1902, %v1870
    %v1922 = vpack.c.bf16 %v1632, %v1632
    %v1923 = vpack.c.bf16 %v1640, %v1640
    %v1924 = vpack.c.bf16 %v1648, %v1648
    %v1925 = vpack.c.bf16 %v1656, %v1656
    %v1927 = vsel %vm597, %v1918, 0
    %v1930 = vsel %vm601, %v1922, 0
    %1932 = vmatprep.subr.bf16.mxu0 0
    %1933 = vmatpush1.bf16.msra.mxu0 %v1930
    %1934 = vmatprep.subr.bf16.mxu0 0
    %1935 = vmatpush1.bf16.msra.mxu0 0
    %1936 = vmatprep.subr.bf16.mxu0 0
    %1937 = vmatpush1.bf16.msra.mxu0 0
    %1938 = vmatprep.subr.bf16.mxu0 0
    %1939 = vmatpush1.bf16.msra.mxu0 0
    %1940 = vmatprep.subr.bf16.mxu0 0
    %1941 = vmatpush1.bf16.msra.mxu0 0
    %1942 = vmatprep.subr.bf16.mxu0 0
    %1943 = vmatpush1.bf16.msra.mxu0 0
    %1944 = vmatprep.subr.bf16.mxu0 0
    %1945 = vmatpush1.bf16.msra.mxu0 0
    %1946 = vmatprep.subr.bf16.mxu0 0
    %1947 = vmatpush1.bf16.msra.mxu0 0
    %1948 = vmatprep.subr.bf16.mxu0 0
    %1949 = vmatpush1.bf16.msra.mxu0 0
    %1950 = vmatprep.subr.bf16.mxu0 0
    %1951 = vmatpush1.bf16.msra.mxu0 0
    %1952 = vmatprep.subr.bf16.mxu0 0
    %1953 = vmatpush1.bf16.msra.mxu0 0
    %1954 = vmatprep.subr.bf16.mxu0 0
    %1955 = vmatpush1.bf16.msra.mxu0 0
    %1956 = vmatprep.subr.bf16.mxu0 0
    %1957 = vmatpush1.bf16.msra.mxu0 0
    %1958 = vmatprep.subr.bf16.mxu0 0
    %1959 = vmatpush1.bf16.msra.mxu0 0
    %1960 = vmatprep.subr.bf16.mxu0 0
    %1961 = vmatpush1.bf16.msra.mxu0 0
    %1962 = vmatprep.subr.bf16.mxu0 0
    %1963 = vmatpush1.bf16.msra.mxu0 0
    %1964 = vmatprep.mubr.bf16.mxu0 0
    %1965 = vmatmul.mubr.bf16.gmra.mrb[0].mxu0 %v1927
    %v1966 = vpop.f32.mrb[0].mxu0
    %v1967 = vadd.f32 0.0, %v1966
    %v1968 = vpop.f32.mrb[0].mxu0
    %v1969 = vpop.f32.mrb[0].mxu0
    %v1970 = vadd.f32 0.0, %v1969
    %v1971 = vpop.f32.mrb[0].mxu0
    %1972 = vdwg.mxu0
    %v1974 = vsel %vm597, %v1919, 0
    %v1977 = vsel %vm601, %v1923, 0
    %1979 = vmatprep.subr.bf16.mxu0 0
    %1980 = vmatpush1.bf16.msra.mxu0 %v1977
    %1981 = vmatprep.subr.bf16.mxu0 0
    %1982 = vmatpush1.bf16.msra.mxu0 0
    %1983 = vmatprep.subr.bf16.mxu0 0
    %1984 = vmatpush1.bf16.msra.mxu0 0
    %1985 = vmatprep.subr.bf16.mxu0 0
    %1986 = vmatpush1.bf16.msra.mxu0 0
    %1987 = vmatprep.subr.bf16.mxu0 0
    %1988 = vmatpush1.bf16.msra.mxu0 0
    %1989 = vmatprep.subr.bf16.mxu0 0
    %1990 = vmatpush1.bf16.msra.mxu0 0
    %1991 = vmatprep.subr.bf16.mxu0 0
    %1992 = vmatpush1.bf16.msra.mxu0 0
    %1993 = vmatprep.subr.bf16.mxu0 0
    %1994 = vmatpush1.bf16.msra.mxu0 0
    %1995 = vmatprep.subr.bf16.mxu0 0
    %1996 = vmatpush1.bf16.msra.mxu0 0
    %1997 = vmatprep.subr.bf16.mxu0 0
    %1998 = vmatpush1.bf16.msra.mxu0 0
    %1999 = vmatprep.subr.bf16.mxu0 0
    %2000 = vmatpush1.bf16.msra.mxu0 0
    %2001 = vmatprep.subr.bf16.mxu0 0
    %2002 = vmatpush1.bf16.msra.mxu0 0
    %2003 = vmatprep.subr.bf16.mxu0 0
    %2004 = vmatpush1.bf16.msra.mxu0 0
    %2005 = vmatprep.subr.bf16.mxu0 0
    %2006 = vmatpush1.bf16.msra.mxu0 0
    %2007 = vmatprep.subr.bf16.mxu0 0
    %2008 = vmatpush1.bf16.msra.mxu0 0
    %2009 = vmatprep.subr.bf16.mxu0 0
    %2010 = vmatpush1.bf16.msra.mxu0 0
    %2011 = vmatprep.mubr.bf16.mxu0 0
    %2012 = vmatmul.mubr.bf16.gmra.mrb[0].mxu0 %v1974
    %v2013 = vpop.f32.mrb[0].mxu0
    %v2014 = vadd.f32 0.0, %v2013
    %v2015 = vpop.f32.mrb[0].mxu0
    %v2016 = vpop.f32.mrb[0].mxu0
    %v2017 = vadd.f32 0.0, %v2016
    %v2018 = vpop.f32.mrb[0].mxu0
    %2019 = vdwg.mxu0
    %v2021 = vsel %vm597, %v1920, 0
    %v2024 = vsel %vm601, %v1924, 0
    %2026 = vmatprep.subr.bf16.mxu0 0
    %2027 = vmatpush1.bf16.msra.mxu0 %v2024
    %2028 = vmatprep.subr.bf16.mxu0 0
    %2029 = vmatpush1.bf16.msra.mxu0 0
    %2030 = vmatprep.subr.bf16.mxu0 0
    %2031 = vmatpush1.bf16.msra.mxu0 0
    %2032 = vmatprep.subr.bf16.mxu0 0
    %2033 = vmatpush1.bf16.msra.mxu0 0
    %2034 = vmatprep.subr.bf16.mxu0 0
    %2035 = vmatpush1.bf16.msra.mxu0 0
    %2036 = vmatprep.subr.bf16.mxu0 0
    %2037 = vmatpush1.bf16.msra.mxu0 0
    %2038 = vmatprep.subr.bf16.mxu0 0
    %2039 = vmatpush1.bf16.msra.mxu0 0
    %2040 = vmatprep.subr.bf16.mxu0 0
    %2041 = vmatpush1.bf16.msra.mxu0 0
    %2042 = vmatprep.subr.bf16.mxu0 0
    %2043 = vmatpush1.bf16.msra.mxu0 0
    %2044 = vmatprep.subr.bf16.mxu0 0
    %2045 = vmatpush1.bf16.msra.mxu0 0
    %2046 = vmatprep.subr.bf16.mxu0 0
    %2047 = vmatpush1.bf16.msra.mxu0 0
    %2048 = vmatprep.subr.bf16.mxu0 0
    %2049 = vmatpush1.bf16.msra.mxu0 0
    %2050 = vmatprep.subr.bf16.mxu0 0
    %2051 = vmatpush1.bf16.msra.mxu0 0
    %2052 = vmatprep.subr.bf16.mxu0 0
    %2053 = vmatpush1.bf16.msra.mxu0 0
    %2054 = vmatprep.subr.bf16.mxu0 0
    %2055 = vmatpush1.bf16.msra.mxu0 0
    %2056 = vmatprep.subr.bf16.mxu0 0
    %2057 = vmatpush1.bf16.msra.mxu0 0
    %2058 = vmatprep.mubr.bf16.mxu0 0
    %2059 = vmatmul.mubr.bf16.gmra.mrb[0].mxu0 %v2021
    %v2060 = vpop.f32.mrb[0].mxu0
    %v2061 = vadd.f32 0.0, %v2060
    %v2062 = vpop.f32.mrb[0].mxu0
    %v2063 = vpop.f32.mrb[0].mxu0
    %v2064 = vadd.f32 0.0, %v2063
    %v2065 = vpop.f32.mrb[0].mxu0
    %2066 = vdwg.mxu0
    %v2068 = vsel %vm597, %v1921, 0
    %v2071 = vsel %vm601, %v1925, 0
    %2073 = vmatprep.subr.bf16.mxu0 0
    %2074 = vmatpush1.bf16.msra.mxu0 %v2071
    %2075 = vmatprep.subr.bf16.mxu0 0
    %2076 = vmatpush1.bf16.msra.mxu0 0
    %2077 = vmatprep.subr.bf16.mxu0 0
    %2078 = vmatpush1.bf16.msra.mxu0 0
    %2079 = vmatprep.subr.bf16.mxu0 0
    %2080 = vmatpush1.bf16.msra.mxu0 0
    %2081 = vmatprep.subr.bf16.mxu0 0
    %2082 = vmatpush1.bf16.msra.mxu0 0
    %2083 = vmatprep.subr.bf16.mxu0 0
    %2084 = vmatpush1.bf16.msra.mxu0 0
    %2085 = vmatprep.subr.bf16.mxu0 0
    %2086 = vmatpush1.bf16.msra.mxu0 0
    %2087 = vmatprep.subr.bf16.mxu0 0
    %2088 = vmatpush1.bf16.msra.mxu0 0
    %2089 = vmatprep.subr.bf16.mxu0 0
    %2090 = vmatpush1.bf16.msra.mxu0 0
    %2091 = vmatprep.subr.bf16.mxu0 0
    %2092 = vmatpush1.bf16.msra.mxu0 0
    %2093 = vmatprep.subr.bf16.mxu0 0
    %2094 = vmatpush1.bf16.msra.mxu0 0
    %2095 = vmatprep.subr.bf16.mxu0 0
    %2096 = vmatpush1.bf16.msra.mxu0 0
    %2097 = vmatprep.subr.bf16.mxu0 0
    %2098 = vmatpush1.bf16.msra.mxu0 0
    %2099 = vmatprep.subr.bf16.mxu0 0
    %2100 = vmatpush1.bf16.msra.mxu0 0
    %2101 = vmatprep.subr.bf16.mxu0 0
    %2102 = vmatpush1.bf16.msra.mxu0 0
    %2103 = vmatprep.subr.bf16.mxu0 0
    %2104 = vmatpush1.bf16.msra.mxu0 0
    %2105 = vmatprep.mubr.bf16.mxu0 0
    %2106 = vmatmul.mubr.bf16.gmra.mrb[0].mxu0 %v2068
    %v2107 = vpop.f32.mrb[0].mxu0
    %v2108 = vadd.f32 0.0, %v2107
    %v2109 = vpop.f32.mrb[0].mxu0
    %v2110 = vpop.f32.mrb[0].mxu0
    %v2111 = vadd.f32 0.0, %v2110
    %v2112 = vpop.f32.mrb[0].mxu0
    %2113 = vdwg.mxu0
    %v2114 = vsel %vm597, %v1967, -inf
    %2115 = vmax.xlane.f32.xlu0 %v2114
    %v2116 = vpop.xlane.xlu0 %2115
    %v2117 = vsel %vm597, %v1970, -inf
    %2118 = vmax.xlane.f32.xlu0 %v2117
    %v2119 = vpop.xlane.xlu0 %2118
    %v2120 = vsel %vm597, %v2014, -inf
    %2121 = vmax.xlane.f32.xlu0 %v2120
    %v2122 = vpop.xlane.xlu0 %2121
    %v2123 = vsel %vm597, %v2017, -inf
    %2124 = vmax.xlane.f32.xlu0 %v2123
    %v2125 = vpop.xlane.xlu0 %2124
    %v2126 = vsel %vm597, %v2061, -inf
    %2127 = vmax.xlane.f32.xlu0 %v2126
    %v2128 = vpop.xlane.xlu0 %2127
    %v2129 = vsel %vm597, %v2064, -inf
    %2130 = vmax.xlane.f32.xlu0 %v2129
    %v2131 = vpop.xlane.xlu0 %2130
    %v2132 = vsel %vm597, %v2108, -inf
    %2133 = vmax.xlane.f32.xlu0 %v2132
    %v2134 = vpop.xlane.xlu0 %2133
    %v2135 = vsel %vm597, %v2111, -inf
    %2136 = vmax.xlane.f32.xlu0 %v2135
    %v2137 = vpop.xlane.xlu0 %2136
    %v2138 = vsub.f32 %v1967, %v2116
    %v2139 = vsub.f32 %v1970, %v2119
    %v2140 = vsub.f32 %v2014, %v2122
    %v2141 = vsub.f32 %v2017, %v2125
    %v2142 = vsub.f32 %v2061, %v2128
    %v2143 = vsub.f32 %v2064, %v2131
    %v2144 = vsub.f32 %v2108, %v2134
    %v2145 = vsub.f32 %v2111, %v2137
    %v2146 = vmul.f32 %v2138, 1.442695
    %v2147 = vpow.pop %v2146
    %v2148 = vmul.f32 %v2139, 1.442695
    %v2149 = vpow.pop %v2148
    %v2150 = vmul.f32 %v2140, 1.442695
    %v2151 = vpow.pop %v2150
    %v2152 = vmul.f32 %v2141, 1.442695
    %v2153 = vpow.pop %v2152
    %v2154 = vmul.f32 %v2142, 1.442695
    %v2155 = vpow.pop %v2154
    %v2156 = vmul.f32 %v2143, 1.442695
    %v2157 = vpow.pop %v2156
    %v2158 = vmul.f32 %v2144, 1.442695
    %v2159 = vpow.pop %v2158
    %v2160 = vmul.f32 %v2145, 1.442695
    %v2161 = vpow.pop %v2160
    %v2162 = vsel %vm597, %v2147, 0.0
    %2163 = vadd.xlane.f32.xlu0 %v2162
    %v2164 = vpop.xlane.xlu0 %2163
    %v2165 = vsel %vm597, %v2149, 0.0
    %2166 = vadd.xlane.f32.xlu0 %v2165
    %v2167 = vpop.xlane.xlu0 %2166
    %v2168 = vsel %vm597, %v2151, 0.0
    %2169 = vadd.xlane.f32.xlu0 %v2168
    %v2170 = vpop.xlane.xlu0 %2169
    %v2171 = vsel %vm597, %v2153, 0.0
    %2172 = vadd.xlane.f32.xlu0 %v2171
    %v2173 = vpop.xlane.xlu0 %2172
    %v2174 = vsel %vm597, %v2155, 0.0
    %2175 = vadd.xlane.f32.xlu0 %v2174
    %v2176 = vpop.xlane.xlu0 %2175
    %v2177 = vsel %vm597, %v2157, 0.0
    %2178 = vadd.xlane.f32.xlu0 %v2177
    %v2179 = vpop.xlane.xlu0 %2178
    %v2180 = vsel %vm597, %v2159, 0.0
    %2181 = vadd.xlane.f32.xlu0 %v2180
    %v2182 = vpop.xlane.xlu0 %2181
    %v2183 = vsel %vm597, %v2161, 0.0
    %2184 = vadd.xlane.f32.xlu0 %v2183
    %v2185 = vpop.xlane.xlu0 %2184
    %v2186 = vpack.c.bf16 %v1635, %v1635
    %v2187 = vpack.c.bf16 %v1643, %v1643
    %v2188 = vpack.c.bf16 %v1651, %v1651
    %v2189 = vpack.c.bf16 %v1659, %v1659
    %v2190 = vpack.c.bf16 %v2149, %v2147
    %v2191 = vpack.c.bf16 %v2153, %v2151
    %v2192 = vpack.c.bf16 %v2157, %v2155
    %v2193 = vpack.c.bf16 %v2161, %v2159
    %v2195 = vsel %vm597, %v2186, 0
    %v2198 = vsel %vm597, %v2190, 0
    %2200 = vmatprep.subr.bf16.mxu0 0
    %2201 = vmatpush1.bf16.xpose.msra.mxu0 %v2198
    %2202 = vmatprep.subr.bf16.mxu0 0
    %2203 = vmatpush1.bf16.xpose.msra.mxu0 0
    %2204 = vmatprep.subr.bf16.mxu0 0
    %2205 = vmatpush1.bf16.xpose.msra.mxu0 0
    %2206 = vmatprep.subr.bf16.mxu0 0
    %2207 = vmatpush1.bf16.xpose.msra.mxu0 0
    %2208 = vmatprep.subr.bf16.mxu0 0
    %2209 = vmatpush1.bf16.xpose.msra.mxu0 0
    %2210 = vmatprep.subr.bf16.mxu0 0
    %2211 = vmatpush1.bf16.xpose.msra.mxu0 0
    %2212 = vmatprep.subr.bf16.mxu0 0
    %2213 = vmatpush1.bf16.xpose.msra.mxu0 0
    %2214 = vmatprep.subr.bf16.mxu0 0
    %2215 = vmatpush1.bf16.xpose.msra.mxu0 0
    %2216 = vmatprep.subr.bf16.mxu0 0
    %2217 = vmatpush1.bf16.xpose.msra.mxu0 0
    %2218 = vmatprep.subr.bf16.mxu0 0
    %2219 = vmatpush1.bf16.xpose.msra.mxu0 0
    %2220 = vmatprep.subr.bf16.mxu0 0
    %2221 = vmatpush1.bf16.xpose.msra.mxu0 0
    %2222 = vmatprep.subr.bf16.mxu0 0
    %2223 = vmatpush1.bf16.xpose.msra.mxu0 0
    %2224 = vmatprep.subr.bf16.mxu0 0
    %2225 = vmatpush1.bf16.xpose.msra.mxu0 0
    %2226 = vmatprep.subr.bf16.mxu0 0
    %2227 = vmatpush1.bf16.xpose.msra.mxu0 0
    %2228 = vmatprep.subr.bf16.mxu0 0
    %2229 = vmatpush1.bf16.xpose.msra.mxu0 0
    %2230 = vmatprep.subr.bf16.mxu0 0
    %2231 = vmatpush1.bf16.xpose.msra.mxu0 0
    %2232 = vmatprep.mubr.bf16.mxu0 0
    %2233 = vmatmul.mubr.bf16.gmra.mrb[0].mxu0 %v2195
    %v2234 = vpop.f32.mrb[0].mxu0
    %v2235 = vadd.f32 0.0, %v2234
    %v2236 = vpop.f32.mrb[0].mxu0
    %v2237 = vpop.f32.mrb[0].mxu0
    %v2238 = vpop.f32.mrb[0].mxu0
    %2239 = vdwg.mxu0
    %v2241 = vsel %vm597, %v2187, 0
    %v2244 = vsel %vm597, %v2191, 0
    %2246 = vmatprep.subr.bf16.mxu0 0
    %2247 = vmatpush1.bf16.xpose.msra.mxu0 %v2244
    %2248 = vmatprep.subr.bf16.mxu0 0
    %2249 = vmatpush1.bf16.xpose.msra.mxu0 0
    %2250 = vmatprep.subr.bf16.mxu0 0
    %2251 = vmatpush1.bf16.xpose.msra.mxu0 0
    %2252 = vmatprep.subr.bf16.mxu0 0
    %2253 = vmatpush1.bf16.xpose.msra.mxu0 0
    %2254 = vmatprep.subr.bf16.mxu0 0
    %2255 = vmatpush1.bf16.xpose.msra.mxu0 0
    %2256 = vmatprep.subr.bf16.mxu0 0
    %2257 = vmatpush1.bf16.xpose.msra.mxu0 0
    %2258 = vmatprep.subr.bf16.mxu0 0
    %2259 = vmatpush1.bf16.xpose.msra.mxu0 0
    %2260 = vmatprep.subr.bf16.mxu0 0
    %2261 = vmatpush1.bf16.xpose.msra.mxu0 0
    %2262 = vmatprep.subr.bf16.mxu0 0
    %2263 = vmatpush1.bf16.xpose.msra.mxu0 0
    %2264 = vmatprep.subr.bf16.mxu0 0
    %2265 = vmatpush1.bf16.xpose.msra.mxu0 0
    %2266 = vmatprep.subr.bf16.mxu0 0
    %2267 = vmatpush1.bf16.xpose.msra.mxu0 0
    %2268 = vmatprep.subr.bf16.mxu0 0
    %2269 = vmatpush1.bf16.xpose.msra.mxu0 0
    %2270 = vmatprep.subr.bf16.mxu0 0
    %2271 = vmatpush1.bf16.xpose.msra.mxu0 0
    %2272 = vmatprep.subr.bf16.mxu0 0
    %2273 = vmatpush1.bf16.xpose.msra.mxu0 0
    %2274 = vmatprep.subr.bf16.mxu0 0
    %2275 = vmatpush1.bf16.xpose.msra.mxu0 0
    %2276 = vmatprep.subr.bf16.mxu0 0
    %2277 = vmatpush1.bf16.xpose.msra.mxu0 0
    %2278 = vmatprep.mubr.bf16.mxu0 0
    %2279 = vmatmul.mubr.bf16.gmra.mrb[0].mxu0 %v2241
    %v2280 = vpop.f32.mrb[0].mxu0
    %v2281 = vadd.f32 0.0, %v2280
    %v2282 = vpop.f32.mrb[0].mxu0
    %v2283 = vpop.f32.mrb[0].mxu0
    %v2284 = vpop.f32.mrb[0].mxu0
    %2285 = vdwg.mxu0
    %v2287 = vsel %vm597, %v2188, 0
    %v2290 = vsel %vm597, %v2192, 0
    %2292 = vmatprep.subr.bf16.mxu0 0
    %2293 = vmatpush1.bf16.xpose.msra.mxu0 %v2290
    %2294 = vmatprep.subr.bf16.mxu0 0
    %2295 = vmatpush1.bf16.xpose.msra.mxu0 0
    %2296 = vmatprep.subr.bf16.mxu0 0
    %2297 = vmatpush1.bf16.xpose.msra.mxu0 0
    %2298 = vmatprep.subr.bf16.mxu0 0
    %2299 = vmatpush1.bf16.xpose.msra.mxu0 0
    %2300 = vmatprep.subr.bf16.mxu0 0
    %2301 = vmatpush1.bf16.xpose.msra.mxu0 0
    %2302 = vmatprep.subr.bf16.mxu0 0
    %2303 = vmatpush1.bf16.xpose.msra.mxu0 0
    %2304 = vmatprep.subr.bf16.mxu0 0
    %2305 = vmatpush1.bf16.xpose.msra.mxu0 0
    %2306 = vmatprep.subr.bf16.mxu0 0
    %2307 = vmatpush1.bf16.xpose.msra.mxu0 0
    %2308 = vmatprep.subr.bf16.mxu0 0
    %2309 = vmatpush1.bf16.xpose.msra.mxu0 0
    %2310 = vmatprep.subr.bf16.mxu0 0
    %2311 = vmatpush1.bf16.xpose.msra.mxu0 0
    %2312 = vmatprep.subr.bf16.mxu0 0
    %2313 = vmatpush1.bf16.xpose.msra.mxu0 0
    %2314 = vmatprep.subr.bf16.mxu0 0
    %2315 = vmatpush1.bf16.xpose.msra.mxu0 0
    %2316 = vmatprep.subr.bf16.mxu0 0
    %2317 = vmatpush1.bf16.xpose.msra.mxu0 0
    %2318 = vmatprep.subr.bf16.mxu0 0
    %2319 = vmatpush1.bf16.xpose.msra.mxu0 0
    %2320 = vmatprep.subr.bf16.mxu0 0
    %2321 = vmatpush1.bf16.xpose.msra.mxu0 0
    %2322 = vmatprep.subr.bf16.mxu0 0
    %2323 = vmatpush1.bf16.xpose.msra.mxu0 0
    %2324 = vmatprep.mubr.bf16.mxu0 0
    %2325 = vmatmul.mubr.bf16.gmra.mrb[0].mxu0 %v2287
    %v2326 = vpop.f32.mrb[0].mxu0
    %v2327 = vadd.f32 0.0, %v2326
    %v2328 = vpop.f32.mrb[0].mxu0
    %v2329 = vpop.f32.mrb[0].mxu0
    %v2330 = vpop.f32.mrb[0].mxu0
    %2331 = vdwg.mxu0
    %v2333 = vsel %vm597, %v2189, 0
    %v2336 = vsel %vm597, %v2193, 0
    %2338 = vmatprep.subr.bf16.mxu0 0
    %2339 = vmatpush1.bf16.xpose.msra.mxu0 %v2336
    %2340 = vmatprep.subr.bf16.mxu0 0
    %2341 = vmatpush1.bf16.xpose.msra.mxu0 0
    %2342 = vmatprep.subr.bf16.mxu0 0
    %2343 = vmatpush1.bf16.xpose.msra.mxu0 0
    %2344 = vmatprep.subr.bf16.mxu0 0
    %2345 = vmatpush1.bf16.xpose.msra.mxu0 0
    %2346 = vmatprep.subr.bf16.mxu0 0
    %2347 = vmatpush1.bf16.xpose.msra.mxu0 0
    %2348 = vmatprep.subr.bf16.mxu0 0
    %2349 = vmatpush1.bf16.xpose.msra.mxu0 0
    %2350 = vmatprep.subr.bf16.mxu0 0
    %2351 = vmatpush1.bf16.xpose.msra.mxu0 0
    %2352 = vmatprep.subr.bf16.mxu0 0
    %2353 = vmatpush1.bf16.xpose.msra.mxu0 0
    %2354 = vmatprep.subr.bf16.mxu0 0
    %2355 = vmatpush1.bf16.xpose.msra.mxu0 0
    %2356 = vmatprep.subr.bf16.mxu0 0
    %2357 = vmatpush1.bf16.xpose.msra.mxu0 0
    %2358 = vmatprep.subr.bf16.mxu0 0
    %2359 = vmatpush1.bf16.xpose.msra.mxu0 0
    %2360 = vmatprep.subr.bf16.mxu0 0
    %2361 = vmatpush1.bf16.xpose.msra.mxu0 0
    %2362 = vmatprep.subr.bf16.mxu0 0
    %2363 = vmatpush1.bf16.xpose.msra.mxu0 0
    %2364 = vmatprep.subr.bf16.mxu0 0
    %2365 = vmatpush1.bf16.xpose.msra.mxu0 0
    %2366 = vmatprep.subr.bf16.mxu0 0
    %2367 = vmatpush1.bf16.xpose.msra.mxu0 0
    %2368 = vmatprep.subr.bf16.mxu0 0
    %2369 = vmatpush1.bf16.xpose.msra.mxu0 0
    %2370 = vmatprep.mubr.bf16.mxu0 0
    %2371 = vmatmul.mubr.bf16.gmra.mrb[0].mxu0 %v2333
    %v2372 = vpop.f32.mrb[0].mxu0
    %v2373 = vadd.f32 0.0, %v2372
    %v2374 = vpop.f32.mrb[0].mxu0
    %v2375 = vpop.f32.mrb[0].mxu0
    %v2376 = vpop.f32.mrb[0].mxu0
    %2377 = vdwg.mxu0
    %v2378 = vrcp.pop %v2164
    %v2379 = vrcp.pop %v2167
    %v2380 = vrcp.pop %v2170
    %v2381 = vrcp.pop %v2173
    %v2382 = vrcp.pop %v2176
    %v2383 = vrcp.pop %v2179
    %v2384 = vrcp.pop %v2182
    %v2385 = vrcp.pop %v2185
    %v2394 = vlaneseq
    %v2395 = vshrl.u32 %v2394, 7
    %v2396 = vsub.s32 %v1068, %v2395
    %v2397 = vrot.slane %v2378, %v2396
    %v2398 = vlaneseq
    %v2399 = vshrl.u32 %v2398, 7
    %v2400 = vsub.s32 %v1073, %v2399
    %v2401 = vrot.slane %v2379, %v2400
    %v2402 = vsel %vm1078, %v2401, %v2397
    %v2403 = vlaneseq
    %v2404 = vshrl.u32 %v2403, 7
    %v2405 = vsub.s32 %v1068, %v2404
    %v2406 = vrot.slane %v2380, %v2405
    %v2407 = vlaneseq
    %v2408 = vshrl.u32 %v2407, 7
    %v2409 = vsub.s32 %v1073, %v2408
    %v2410 = vrot.slane %v2381, %v2409
    %v2411 = vsel %vm1078, %v2410, %v2406
    %v2412 = vlaneseq
    %v2413 = vshrl.u32 %v2412, 7
    %v2414 = vsub.s32 %v1068, %v2413
    %v2415 = vrot.slane %v2382, %v2414
    %v2416 = vlaneseq
    %v2417 = vshrl.u32 %v2416, 7
    %v2418 = vsub.s32 %v1073, %v2417
    %v2419 = vrot.slane %v2383, %v2418
    %v2420 = vsel %vm1078, %v2419, %v2415
    %v2421 = vlaneseq
    %v2422 = vshrl.u32 %v2421, 7
    %v2423 = vsub.s32 %v1068, %v2422
    %v2424 = vrot.slane %v2384, %v2423
    %v2425 = vlaneseq
    %v2426 = vshrl.u32 %v2425, 7
    %v2427 = vsub.s32 %v1073, %v2426
    %v2428 = vrot.slane %v2385, %v2427
    %v2429 = vsel %vm1078, %v2428, %v2424
    %v2430 = vsel %vm1107, %v2402, %v2402
    %v2431 = vsel %vm1109, %v2402, %v2430
    %v2432 = vsel %vm1111, %v2402, %v2431
    %v2433 = vsel %vm1113, %v2402, %v2432
    %v2434 = vsel %vm1115, %v2402, %v2433
    %v2435 = vsel %vm1117, %v2402, %v2434
    %v2436 = vsel %vm1107, %v2411, %v2411
    %v2437 = vsel %vm1109, %v2411, %v2436
    %v2438 = vsel %vm1111, %v2411, %v2437
    %v2439 = vsel %vm1113, %v2411, %v2438
    %v2440 = vsel %vm1115, %v2411, %v2439
    %v2441 = vsel %vm1117, %v2411, %v2440
    %v2442 = vsel %vm1107, %v2420, %v2420
    %v2443 = vsel %vm1109, %v2420, %v2442
    %v2444 = vsel %vm1111, %v2420, %v2443
    %v2445 = vsel %vm1113, %v2420, %v2444
    %v2446 = vsel %vm1115, %v2420, %v2445
    %v2447 = vsel %vm1117, %v2420, %v2446
    %v2448 = vsel %vm1107, %v2429, %v2429
    %v2449 = vsel %vm1109, %v2429, %v2448
    %v2450 = vsel %vm1111, %v2429, %v2449
    %v2451 = vsel %vm1113, %v2429, %v2450
    %v2452 = vsel %vm1115, %v2429, %v2451
    %v2453 = vsel %vm1117, %v2429, %v2452
    %v2458 = vmul.f32 %v2235, %v2435
    %v2459 = vmul.f32 %v2281, %v2441
    %v2460 = vmul.f32 %v2327, %v2447
    %v2461 = vmul.f32 %v2373, %v2453
    %2463 = vrot.lane.b32.xlu0 %v2458, 120
    %v2464 = vpop.permute.xlu0 %2463
    %2467 = vrot.lane.b32.xlu0 %v2459, 120
    %v2468 = vpop.permute.xlu0 %2467
    %2471 = vrot.lane.b32.xlu0 %v2460, 120
    %v2472 = vpop.permute.xlu0 %2471
    %2475 = vrot.lane.b32.xlu0 %v2461, 120
    %v2476 = vpop.permute.xlu0 %2475
    %v2478 = vld [vmem:[%s3] sm:$0xf]
    %v2479 = vld [vmem:[%s3 + $0x4] sm:$0xf]
    %v2480 = vld [vmem:[%s3 + $0x8] sm:$0xf]
    %v2481 = vld [vmem:[%s3 + $0xc] sm:$0xf]
    %v2482 = vld [vmem:[%s3 + $0x10] sm:$0xf]
    %v2483 = vld [vmem:[%s3 + $0x14] sm:$0xf]
    %v2484 = vld [vmem:[%s3 + $0x18] sm:$0xf]
    %v2485 = vld [vmem:[%s3 + $0x1c] sm:$0xf]
    %v2486 = vpack.c.bf16 %v2464, %v2458
    %v2487 = vpack.c.bf16 %v2468, %v2459
    %v2488 = vpack.c.bf16 %v2472, %v2460
    %v2489 = vpack.c.bf16 %v2476, %v2461
    %v2490 = vld [vmem:[%s4] sm:$0xff]
    %v2491 = vld [vmem:[%s4 + $0x8] sm:$0xff]
    %v2492 = vld [vmem:[%s4 + $0x10] sm:$0xff]
    %v2493 = vld [vmem:[%s4 + $0x18] sm:$0xff]
    %v2494 = vld [vmem:[%s4 + $0x20] sm:$0xff]
    %v2495 = vld [vmem:[%s4 + $0x28] sm:$0xff]
    %v2496 = vld [vmem:[%s4 + $0x30] sm:$0xff]
    %v2497 = vld [vmem:[%s4 + $0x38] sm:$0xff]
    %2499 = vset.pattern.permute.xlu0 0
    %2500 = vperm.xlu0 %2499, %v2490
    %v2501 = vpop.permute.xlu0 %2500
    %2504 = vset.pattern.permute.xlu0 0
    %2505 = vperm.xlu0 %2504, %v2491
    %v2506 = vpop.permute.xlu0 %2505
    %2509 = vset.pattern.permute.xlu0 0
    %2510 = vperm.xlu0 %2509, %v2492
    %v2511 = vpop.permute.xlu0 %2510
    %2514 = vset.pattern.permute.xlu0 0
    %2515 = vperm.xlu0 %2514, %v2493
    %v2516 = vpop.permute.xlu0 %2515
    %2519 = vset.pattern.permute.xlu0 0
    %2520 = vperm.xlu0 %2519, %v2494
    %v2521 = vpop.permute.xlu0 %2520
    %2524 = vset.pattern.permute.xlu0 0
    %2525 = vperm.xlu0 %2524, %v2495
    %v2526 = vpop.permute.xlu0 %2525
    %2529 = vset.pattern.permute.xlu0 0
    %2530 = vperm.xlu0 %2529, %v2496
    %v2531 = vpop.permute.xlu0 %2530
    %2534 = vset.pattern.permute.xlu0 0
    %2535 = vperm.xlu0 %2534, %v2497
    %v2536 = vpop.permute.xlu0 %2535
    %v2546 = vunpack.c.l.b16 %v2478
    %v2547 = vunpack.c.l.b16 %v2479
    %v2548 = vunpack.c.l.b16 %v2480
    %v2549 = vunpack.c.l.b16 %v2481
    %v2550 = vunpack.c.l.b16 %v2482
    %v2551 = vunpack.c.l.b16 %v2483
    %v2552 = vunpack.c.l.b16 %v2484
    %v2553 = vunpack.c.l.b16 %v2485
    %v2554 = vpack.c.b16 %v2547, %v2546
    %v2555 = vpack.c.b16 %v2549, %v2548
    %v2556 = vpack.c.b16 %v2551, %v2550
    %v2557 = vpack.c.b16 %v2553, %v2552
    %v2559 = vsel %vm211, %v2554, 0
    %v2562 = vsel %vm211, %v2555, 0
    %v2565 = vsel %vm211, %v2556, 0
    %v2568 = vsel %vm211, %v2557, 0
    %2570 = vmatprep.subr.bf16.mxu0 0
    %2571 = vmatpush1.bf16.msra.mxu0 %v2486
    %2572 = vmatprep.subr.bf16.mxu0 0
    %2573 = vmatpush1.bf16.msra.mxu0 %v2487
    %2574 = vmatprep.subr.bf16.mxu0 0
    %2575 = vmatpush1.bf16.msra.mxu0 %v2488
    %2576 = vmatprep.subr.bf16.mxu0 0
    %2577 = vmatpush1.bf16.msra.mxu0 %v2489
    %2578 = vmatprep.subr.bf16.mxu0 0
    %2579 = vmatpush1.bf16.msra.mxu0 0
    %2580 = vmatprep.subr.bf16.mxu0 0
    %2581 = vmatpush1.bf16.msra.mxu0 0
    %2582 = vmatprep.subr.bf16.mxu0 0
    %2583 = vmatpush1.bf16.msra.mxu0 0
    %2584 = vmatprep.subr.bf16.mxu0 0
    %2585 = vmatpush1.bf16.msra.mxu0 0
    %2586 = vmatprep.subr.bf16.mxu0 0
    %2587 = vmatpush1.bf16.msra.mxu0 0
    %2588 = vmatprep.subr.bf16.mxu0 0
    %2589 = vmatpush1.bf16.msra.mxu0 0
    %2590 = vmatprep.subr.bf16.mxu0 0
    %2591 = vmatpush1.bf16.msra.mxu0 0
    %2592 = vmatprep.subr.bf16.mxu0 0
    %2593 = vmatpush1.bf16.msra.mxu0 0
    %2594 = vmatprep.subr.bf16.mxu0 0
    %2595 = vmatpush1.bf16.msra.mxu0 0
    %2596 = vmatprep.subr.bf16.mxu0 0
    %2597 = vmatpush1.bf16.msra.mxu0 0
    %2598 = vmatprep.subr.bf16.mxu0 0
    %2599 = vmatpush1.bf16.msra.mxu0 0
    %2600 = vmatprep.subr.bf16.mxu0 0
    %2601 = vmatpush1.bf16.msra.mxu0 0
    %2602 = vmatprep.mubr.bf16.mxu0 0
    %2603 = vmatmul.mubr.bf16.gmra.mrb[0].mxu0 %v2559
    %v2604 = vpop.f32.mrb[0].mxu0
    %v2605 = vadd.f32 %v2501, %v2604
    %v2606 = vpop.f32.mrb[0].mxu0
    %v2607 = vpop.f32.mrb[0].mxu0
    %v2608 = vadd.f32 %v2506, %v2607
    %v2609 = vpop.f32.mrb[0].mxu0
    %2610 = vmatprep.mubr.bf16.mxu0 0
    %2611 = vmatmul.mubr.bf16.gmra.mrb[0].mxu0 %v2562
    %v2612 = vpop.f32.mrb[0].mxu0
    %v2613 = vadd.f32 %v2511, %v2612
    %v2614 = vpop.f32.mrb[0].mxu0
    %v2615 = vpop.f32.mrb[0].mxu0
    %v2616 = vadd.f32 %v2516, %v2615
    %v2617 = vpop.f32.mrb[0].mxu0
    %2618 = vmatprep.mubr.bf16.mxu0 0
    %2619 = vmatmul.mubr.bf16.gmra.mrb[0].mxu0 %v2565
    %v2620 = vpop.f32.mrb[0].mxu0
    %v2621 = vadd.f32 %v2521, %v2620
    %v2622 = vpop.f32.mrb[0].mxu0
    %v2623 = vpop.f32.mrb[0].mxu0
    %v2624 = vadd.f32 %v2526, %v2623
    %v2625 = vpop.f32.mrb[0].mxu0
    %2626 = vmatprep.mubr.bf16.mxu0 0
    %2627 = vmatmul.mubr.bf16.gmra.mrb[0].mxu0 %v2568
    %v2628 = vpop.f32.mrb[0].mxu0
    %v2629 = vadd.f32 %v2531, %v2628
    %v2630 = vpop.f32.mrb[0].mxu0
    %v2631 = vpop.f32.mrb[0].mxu0
    %v2632 = vadd.f32 %v2536, %v2631
    %v2633 = vpop.f32.mrb[0].mxu0
    %2634 = vdwg.mxu0
    %2635 = vxpose.xlu0.b32.start [1/16] %v2605, 128
    %2636 = vxpose.xlu0.b32.cont [2/16] %v2608, 128
    %2637 = vxpose.xlu0.b32.cont [3/16] %v2613, 128
    %2638 = vxpose.xlu0.b32.cont [4/16] %v2616, 128
    %2639 = vxpose.xlu0.b32.cont [5/16] %v2621, 128
    %2640 = vxpose.xlu0.b32.cont [6/16] %v2624, 128
    %2641 = vxpose.xlu0.b32.cont [7/16] %v2629, 128
    %2642 = vxpose.xlu0.b32.cont [8/16] %v2632, 128
    %2643 = vxpose.xlu0.b32.cont [9/16] 0.0, 128
    %2644 = vxpose.xlu0.b32.cont [10/16] 0.0, 128
    %2645 = vxpose.xlu0.b32.cont [11/16] 0.0, 128
    %2646 = vxpose.xlu0.b32.cont [12/16] 0.0, 128
    %2647 = vxpose.xlu0.b32.cont [13/16] 0.0, 128
    %2648 = vxpose.xlu0.b32.cont [14/16] 0.0, 128
    %2649 = vxpose.xlu0.b32.cont [15/16] 0.0, 128
    %2650 = vxpose.xlu0.b32.end [16/16] 0.0, 128
    %v2651 = vpop.trf.xlu0
    %v2652 = vpop.trf.xlu0
    %v2653 = vpop.trf.xlu0
    %v2654 = vpop.trf.xlu0
    %v2655 = vpop.trf.xlu0
    %v2656 = vpop.trf.xlu0
    %v2657 = vpop.trf.xlu0
    %v2658 = vpop.trf.xlu0
    %v2659 = vpop.trf.xlu0
    %v2660 = vpop.trf.xlu0
    %v2661 = vpop.trf.xlu0
    %v2662 = vpop.trf.xlu0
    %v2663 = vpop.trf.xlu0
    %v2664 = vpop.trf.xlu0
    %v2665 = vpop.trf.xlu0
    %v2666 = vpop.trf.xlu0
    %s2667 = scalar_lea.vmem [#allocation2], 8
    %2668 = vst.msk [vmem:[%s2667] sm:$0xff] %vm211, %v2651
    // Predicated region
    $region22: #{tpu_custom_call.1} parent=1 // pred_check
      _
    $region23: #{tpu_custom_call.1} parent=1 // pred_check_branch
      %2670 = sbr.rel (0) target = $region25
    $region24: #{tpu_custom_call.1} parent=1 // pred_region
      %s2672 = ssub.s32 256, 256
      %2673 = vsyncadd [#allocation3], %s2672
      %s2674 = sshll.u32 [#allocation2], 4
      %s2675 = int_to_ptr.vmem [resolvable:$true] %s2674
      %2680 = dma.vmem_to_hbm [thread:$0]  %s2675, 256, %s5, [#allocation3], 128, 128, 8
    $region25: #{tpu_custom_call.1} parent=1 // pred_fallthru
      _
    // Predicated region
    $region26: #{tpu_custom_call.1} parent=1 // pred_check
      _
    $region27: #{tpu_custom_call.1} parent=1 // pred_check_branch
      %2682 = sbr.rel (0) target = $region29
    $region28: #{tpu_custom_call.1} parent=1 // pred_region
      %2683 = dma.done [#allocation3], 256
    $region29: #{tpu_custom_call.1} parent=1 // pred_fallthru
      _
    %2684 = vsyncpa [#allocation3], 1

</llo_original>
